<compile_context>
chip_gen: v5e
topology: v5e:2x2
jax: 0.10.0
libtpu: 0.0.40
codegen_flags: <defaults>
</compile_context>

<pallas_src>
import jax
import jax.numpy as jnp
from jax import lax
from jax.experimental import pallas as pl
from jax.experimental.pallas import tpu as pltpu

LANES = 128     # vreg lane width  (batch packed here)
TCHUNK = 8      # vreg sublane depth (time steps per dense store)


def _round_up(n, m):
    return ((n + m - 1) // m) * m


def neural_multiplier_kernel(xpad_ref, operand_ref, params_ref, out_ref):
    """xpad_ref: (Tp, 128) VMEM; operand_ref: (D,) SMEM; params_ref: (5,) SMEM;
    out_ref: (T, 128) VMEM.  One grid step = one 128-wide batch tile."""
    T = out_ref.shape[0]
    D = operand_ref.shape[0]
    nload = _round_up(TCHUNK + D - 1, TCHUNK)   # aligned input slab per chunk
    nchunks = T // TCHUNK

    # Hoist SMEM scalar reads out of the time loop (loop-invariant).
    ops = [operand_ref[k] for k in range(D)]
    w1 = params_ref[0]
    b1 = params_ref[1]
    w2 = params_ref[2]
    b2 = params_ref[3]
    w3 = params_ref[4]

    # Sublane index grid used to pack 8 recurrence rows into one dense tile.
    sub_idx = lax.broadcasted_iota(jnp.int32, (TCHUNK, LANES), 0)

    def chunk_body(c, h):
        t0 = pl.multiple_of(c * TCHUNK, TCHUNK)
        # Dense, sublane-aligned slab covering this chunk's receptive field.
        xp = xpad_ref[pl.ds(t0, nload), :]                    # (nload, 128)

        # conv1d (cross-correlation): accumulator stays in vregs.
        # acc[j, :] == panel[t0 + j, batch_lane]
        acc = ops[0] * xp[0:TCHUNK, :]
        for k in range(1, D):
            acc = acc + ops[k] * xp[k:k + TCHUNK, :]

        # AdderCell recurrence: 8 serial steps, fully unrolled; h is vreg-resident.
        chunk = jnp.zeros((TCHUNK, LANES), jnp.float32)
        for j in range(TCHUNK):
            s = acc[j:j + 1, :] + h                           # (1, 128)
            o = w1 * jnp.cos(jnp.pi * s) + b1
            h = w3 * (s - o)
            chunk = jnp.where(sub_idx == j, w2 * o + b2, chunk)

        # One dense (8, 128) store per chunk instead of 8 masked row stores.
        out_ref[pl.ds(t0, TCHUNK), :] = chunk
        return h

    h0 = jnp.zeros((1, LANES), jnp.float32)
    lax.fori_loop(0, nchunks, chunk_body, h0)


def neural_multiplier(x, operand, params, shift=0):
    """x: (B, L) f32, operand: (D,) f32, params: (5,) f32 [w1,b1,w2,b2,w3]."""
    B, L = x.shape
    D = operand.shape[0]

    BS = pl.cdiv(B, LANES)              # number of 128-wide batch tiles (grid)
    BP = BS * LANES
    T = _round_up(L, TCHUNK)            # time padded to whole chunks
    halo = _round_up(D - 1, TCHUNK)     # right pad so aligned chunk loads stay in-bounds
    Tp = T + halo

    # glue: left-pad D-1 (conv), right-pad to Tp, pad batch to full lane tiles,
    # then lay out as (batch_tile, time, lane).
    x_pad = jnp.pad(x.astype(jnp.float32),
                    ((0, BP - B), (D - 1, Tp - (D - 1) - L)))      # (BP, Tp)
    x_pad = x_pad.reshape(BS, LANES, Tp).transpose(0, 2, 1)        # (BS, Tp, 128)

    # Per-grid-step VMEM: double-buffered input + output blocks.
    vmem_need = 2 * (Tp + T) * LANES * 4 + (1 << 20)
    vmem_limit = int(min(96 * 2**20, max(32 * 2**20, vmem_need)))
    # TODO(synk): for very large L on v7x (64 MiB VMEM), add a second ("arbitrary")
    # grid axis over time chunks with a halo'd x_pad block instead of whole-T blocks.

    out_t = pl.pallas_call(
        neural_multiplier_kernel,
        out_shape=jax.ShapeDtypeStruct((BS, T, LANES), jnp.float32),
        grid=(BS,),
        in_specs=[
            pl.BlockSpec((None, Tp, LANES), lambda b: (b, 0, 0)),      # x_pad tile
            pl.BlockSpec(memory_space=pltpu.MemorySpace.SMEM),         # operand (D,)
            pl.BlockSpec(memory_space=pltpu.MemorySpace.SMEM),         # params (5,)
        ],
        out_specs=pl.BlockSpec((None, T, LANES), lambda b: (b, 0, 0)),
        compiler_params=pltpu.CompilerParams(
            dimension_semantics=("parallel",),
            vmem_limit_bytes=vmem_limit,
        ),
    )(x_pad, operand.astype(jnp.float32), params.astype(jnp.float32))

    out = out_t.transpose(0, 2, 1).reshape(BP, T)[:B, :L]   # == .squeeze() for B,L > 1
    if shift > 0:
        out = jnp.pad(out[:, shift:], ((0, 0), (0, shift)))
    return out


def ref_forward(x, operand, params):
    """Pure-JAX reference mirroring the PyTorch forward exactly."""
    B, L = x.shape
    D = operand.shape[0]
    x_pad = jnp.pad(x, ((0, 0), (D - 1, 0)))
    panel = jnp.stack(
        [jnp.sum(x_pad[:, t:t + D] * operand, axis=-1) for t in range(L)], axis=-1)
    w1, b1, w2, b2, w3 = [params[i] for i in range(5)]
    h = jnp.zeros((B,), jnp.float32)
    outs = []
    for t in range(L):
        s = panel[:, t] + h
        o = w1 * jnp.cos(jnp.pi * s) + b1
        h = w3 * (s - o)
        outs.append(w2 * o + b2)
    return jnp.stack(outs, axis=-1)


if __name__ == "__main__":
    key = jax.random.PRNGKey(0)
    k1, k2 = jax.random.split(key)

    B, L, D = 4, 19, 8           # batch, sequence length, operand_dim (exercises padding)
    x = jax.random.normal(k1, (B, L), dtype=jnp.float32)
    operand = jax.random.normal(k2, (D,), dtype=jnp.float32)   # torch.randn(operand_dim)

    # AdderCell(final_result=False) deterministic params: w1=-0.5 b1=0.5 w2=1 b2=0 w3=0.5
    params = jnp.array([-0.5, 0.5, 1.0, 0.0, 0.5], dtype=jnp.float32)

    out = neural_multiplier(x, operand, params, shift=0)
    out = jax.block_until_ready(out)

    ref = ref_forward(x, operand, params)
    assert out.shape == (B, L), out.shape
    assert jnp.allclose(out, ref, atol=1e-4, rtol=1e-4), (out, ref)
    print("KERNEL_OK")
</pallas_src>

<mosaic_0001>
module attributes {stable_mosaic.version = 11 : i64} {
  func.func @neural_multiplier_kernel(%arg0: i32, %arg1: memref<1x32x128xf32, #tpu.memory_space<vmem>>, %arg2: memref<8xf32, #tpu.memory_space<smem>>, %arg3: memref<5xf32, #tpu.memory_space<smem>>, %arg4: memref<1x24x128xf32, #tpu.memory_space<vmem>>) attributes {dimension_semantics = [#tpu.dimension_semantics<parallel>], iteration_bounds = array<i64: 1>, scalar_prefetch = 0 : i64, scratch_operands = 0 : i64, tpu.core_type = #tpu.core_type<tc>, window_params = [{transform_indices = @transform_0, window_bounds = array<i64: 1, 32, 128>}, {transform_indices = @transform_1, window_bounds = array<i64: 8>}, {transform_indices = @transform_2, window_bounds = array<i64: 5>}, {transform_indices = @transform_3, window_bounds = array<i64: 1, 24, 128>}]} {
    %c0 = arith.constant 0 : index
    %0 = memref.load %arg2[%c0] : memref<8xf32, #tpu.memory_space<smem>>
    %c1 = arith.constant 1 : index
    %1 = memref.load %arg2[%c1] : memref<8xf32, #tpu.memory_space<smem>>
    %c2 = arith.constant 2 : index
    %2 = memref.load %arg2[%c2] : memref<8xf32, #tpu.memory_space<smem>>
    %c3 = arith.constant 3 : index
    %3 = memref.load %arg2[%c3] : memref<8xf32, #tpu.memory_space<smem>>
    %c4 = arith.constant 4 : index
    %4 = memref.load %arg2[%c4] : memref<8xf32, #tpu.memory_space<smem>>
    %c5 = arith.constant 5 : index
    %5 = memref.load %arg2[%c5] : memref<8xf32, #tpu.memory_space<smem>>
    %c6 = arith.constant 6 : index
    %6 = memref.load %arg2[%c6] : memref<8xf32, #tpu.memory_space<smem>>
    %c7 = arith.constant 7 : index
    %7 = memref.load %arg2[%c7] : memref<8xf32, #tpu.memory_space<smem>>
    %c0_0 = arith.constant 0 : index
    %8 = memref.load %arg3[%c0_0] : memref<5xf32, #tpu.memory_space<smem>>
    %c1_1 = arith.constant 1 : index
    %9 = memref.load %arg3[%c1_1] : memref<5xf32, #tpu.memory_space<smem>>
    %c2_2 = arith.constant 2 : index
    %10 = memref.load %arg3[%c2_2] : memref<5xf32, #tpu.memory_space<smem>>
    %c3_3 = arith.constant 3 : index
    %11 = memref.load %arg3[%c3_3] : memref<5xf32, #tpu.memory_space<smem>>
    %c4_4 = arith.constant 4 : index
    %12 = memref.load %arg3[%c4_4] : memref<5xf32, #tpu.memory_space<smem>>
    %13 = tpu.iota {dimensions = array<i32: 0>} : vector<8x128xi32>
    %cst = arith.constant 0.000000e+00 : f32
    %14 = vector.broadcast %cst : f32 to vector<1x128xf32>
    %c0_i32 = arith.constant 0 : i32
    %c3_i32 = arith.constant 3 : i32
    %15 = arith.addi %c0_i32, %c3_i32 : i32
    %c1_i32 = arith.constant 1 : i32
    %16 = scf.for %arg5 = %c0_i32 to %15 step %c1_i32 iter_args(%arg6 = %14) -> (vector<1x128xf32>)  : i32 {
      %c8_i32 = arith.constant 8 : i32
      %17 = arith.muli %arg5, %c8_i32 : i32
      %18 = tpu.assume_multiple %17, 8 : i32
      %c0_6 = arith.constant 0 : index
      %19 = arith.index_cast %18 : i32 to index
      %c0_7 = arith.constant 0 : index
      %20 = vector.load %arg1[%c0_6, %19, %c0_7] : memref<1x32x128xf32, #tpu.memory_space<vmem>>, vector<1x16x128xf32>
      %21 = vector.shape_cast %20 : vector<1x16x128xf32> to vector<16x128xf32>
      %22 = vector.extract_strided_slice %21 {offsets = [0, 0], sizes = [8, 128], strides = [1, 1]} : vector<16x128xf32> to vector<8x128xf32>
      %23 = vector.broadcast %0 : f32 to vector<8x128xf32>
      %24 = arith.mulf %23, %22 : vector<8x128xf32>
      %25 = vector.extract_strided_slice %21 {offsets = [1, 0], sizes = [8, 128], strides = [1, 1]} : vector<16x128xf32> to vector<8x128xf32>
      %26 = vector.broadcast %1 : f32 to vector<8x128xf32>
      %27 = arith.mulf %26, %25 : vector<8x128xf32>
      %28 = arith.addf %24, %27 : vector<8x128xf32>
      %29 = vector.extract_strided_slice %21 {offsets = [2, 0], sizes = [8, 128], strides = [1, 1]} : vector<16x128xf32> to vector<8x128xf32>
      %30 = vector.broadcast %2 : f32 to vector<8x128xf32>
      %31 = arith.mulf %30, %29 : vector<8x128xf32>
      %32 = arith.addf %28, %31 : vector<8x128xf32>
      %33 = vector.extract_strided_slice %21 {offsets = [3, 0], sizes = [8, 128], strides = [1, 1]} : vector<16x128xf32> to vector<8x128xf32>
      %34 = vector.broadcast %3 : f32 to vector<8x128xf32>
      %35 = arith.mulf %34, %33 : vector<8x128xf32>
      %36 = arith.addf %32, %35 : vector<8x128xf32>
      %37 = vector.extract_strided_slice %21 {offsets = [4, 0], sizes = [8, 128], strides = [1, 1]} : vector<16x128xf32> to vector<8x128xf32>
      %38 = vector.broadcast %4 : f32 to vector<8x128xf32>
      %39 = arith.mulf %38, %37 : vector<8x128xf32>
      %40 = arith.addf %36, %39 : vector<8x128xf32>
      %41 = vector.extract_strided_slice %21 {offsets = [5, 0], sizes = [8, 128], strides = [1, 1]} : vector<16x128xf32> to vector<8x128xf32>
      %42 = vector.broadcast %5 : f32 to vector<8x128xf32>
      %43 = arith.mulf %42, %41 : vector<8x128xf32>
      %44 = arith.addf %40, %43 : vector<8x128xf32>
      %45 = vector.extract_strided_slice %21 {offsets = [6, 0], sizes = [8, 128], strides = [1, 1]} : vector<16x128xf32> to vector<8x128xf32>
      %46 = vector.broadcast %6 : f32 to vector<8x128xf32>
      %47 = arith.mulf %46, %45 : vector<8x128xf32>
      %48 = arith.addf %44, %47 : vector<8x128xf32>
      %49 = vector.extract_strided_slice %21 {offsets = [7, 0], sizes = [8, 128], strides = [1, 1]} : vector<16x128xf32> to vector<8x128xf32>
      %50 = vector.broadcast %7 : f32 to vector<8x128xf32>
      %51 = arith.mulf %50, %49 : vector<8x128xf32>
      %52 = arith.addf %48, %51 : vector<8x128xf32>
      %cst_8 = arith.constant 0.000000e+00 : f32
      %53 = vector.broadcast %cst_8 : f32 to vector<8x128xf32>
      %54 = vector.extract_strided_slice %52 {offsets = [0, 0], sizes = [1, 128], strides = [1, 1]} : vector<8x128xf32> to vector<1x128xf32>
      %55 = arith.addf %54, %arg6 : vector<1x128xf32>
      %cst_9 = arith.constant 3.14159274 : f32
      %56 = vector.broadcast %cst_9 : f32 to vector<1x128xf32>
      %57 = arith.mulf %56, %55 : vector<1x128xf32>
      %58 = math.cos %57 : vector<1x128xf32>
      %59 = vector.broadcast %8 : f32 to vector<1x128xf32>
      %60 = arith.mulf %59, %58 : vector<1x128xf32>
      %61 = vector.broadcast %9 : f32 to vector<1x128xf32>
      %62 = arith.addf %60, %61 : vector<1x128xf32>
      %63 = arith.subf %55, %62 : vector<1x128xf32>
      %64 = vector.broadcast %12 : f32 to vector<1x128xf32>
      %65 = arith.mulf %64, %63 : vector<1x128xf32>
      %c0_i32_10 = arith.constant 0 : i32
      %66 = vector.broadcast %c0_i32_10 : i32 to vector<8x128xi32>
      %67 = arith.cmpi eq, %13, %66 : vector<8x128xi32>
      %68 = vector.broadcast %10 : f32 to vector<1x128xf32>
      %69 = arith.mulf %68, %62 : vector<1x128xf32>
      %70 = vector.broadcast %11 : f32 to vector<1x128xf32>
      %71 = arith.addf %69, %70 : vector<1x128xf32>
      %72 = vector.shape_cast %71 : vector<1x128xf32> to vector<1x128xf32>
      %73 = vector.broadcast %72 : vector<1x128xf32> to vector<8x128xf32>
      %74 = arith.select %67, %73, %53 : vector<8x128xi1>, vector<8x128xf32>
      %75 = vector.extract_strided_slice %52 {offsets = [1, 0], sizes = [1, 128], strides = [1, 1]} : vector<8x128xf32> to vector<1x128xf32>
      %76 = arith.addf %75, %65 : vector<1x128xf32>
      %cst_11 = arith.constant 3.14159274 : f32
      %77 = vector.broadcast %cst_11 : f32 to vector<1x128xf32>
      %78 = arith.mulf %77, %76 : vector<1x128xf32>
      %79 = math.cos %78 : vector<1x128xf32>
      %80 = vector.broadcast %8 : f32 to vector<1x128xf32>
      %81 = arith.mulf %80, %79 : vector<1x128xf32>
      %82 = vector.broadcast %9 : f32 to vector<1x128xf32>
      %83 = arith.addf %81, %82 : vector<1x128xf32>
      %84 = arith.subf %76, %83 : vector<1x128xf32>
      %85 = vector.broadcast %12 : f32 to vector<1x128xf32>
      %86 = arith.mulf %85, %84 : vector<1x128xf32>
      %c1_i32_12 = arith.constant 1 : i32
      %87 = vector.broadcast %c1_i32_12 : i32 to vector<8x128xi32>
      %88 = arith.cmpi eq, %13, %87 : vector<8x128xi32>
      %89 = vector.broadcast %10 : f32 to vector<1x128xf32>
      %90 = arith.mulf %89, %83 : vector<1x128xf32>
      %91 = vector.broadcast %11 : f32 to vector<1x128xf32>
      %92 = arith.addf %90, %91 : vector<1x128xf32>
      %93 = vector.shape_cast %92 : vector<1x128xf32> to vector<1x128xf32>
      %94 = vector.broadcast %93 : vector<1x128xf32> to vector<8x128xf32>
      %95 = arith.select %88, %94, %74 : vector<8x128xi1>, vector<8x128xf32>
      %96 = vector.extract_strided_slice %52 {offsets = [2, 0], sizes = [1, 128], strides = [1, 1]} : vector<8x128xf32> to vector<1x128xf32>
      %97 = arith.addf %96, %86 : vector<1x128xf32>
      %cst_13 = arith.constant 3.14159274 : f32
      %98 = vector.broadcast %cst_13 : f32 to vector<1x128xf32>
      %99 = arith.mulf %98, %97 : vector<1x128xf32>
      %100 = math.cos %99 : vector<1x128xf32>
      %101 = vector.broadcast %8 : f32 to vector<1x128xf32>
      %102 = arith.mulf %101, %100 : vector<1x128xf32>
      %103 = vector.broadcast %9 : f32 to vector<1x128xf32>
      %104 = arith.addf %102, %103 : vector<1x128xf32>
      %105 = arith.subf %97, %104 : vector<1x128xf32>
      %106 = vector.broadcast %12 : f32 to vector<1x128xf32>
      %107 = arith.mulf %106, %105 : vector<1x128xf32>
      %c2_i32 = arith.constant 2 : i32
      %108 = vector.broadcast %c2_i32 : i32 to vector<8x128xi32>
      %109 = arith.cmpi eq, %13, %108 : vector<8x128xi32>
      %110 = vector.broadcast %10 : f32 to vector<1x128xf32>
      %111 = arith.mulf %110, %104 : vector<1x128xf32>
      %112 = vector.broadcast %11 : f32 to vector<1x128xf32>
      %113 = arith.addf %111, %112 : vector<1x128xf32>
      %114 = vector.shape_cast %113 : vector<1x128xf32> to vector<1x128xf32>
      %115 = vector.broadcast %114 : vector<1x128xf32> to vector<8x128xf32>
      %116 = arith.select %109, %115, %95 : vector<8x128xi1>, vector<8x128xf32>
      %117 = vector.extract_strided_slice %52 {offsets = [3, 0], sizes = [1, 128], strides = [1, 1]} : vector<8x128xf32> to vector<1x128xf32>
      %118 = arith.addf %117, %107 : vector<1x128xf32>
      %cst_14 = arith.constant 3.14159274 : f32
      %119 = vector.broadcast %cst_14 : f32 to vector<1x128xf32>
      %120 = arith.mulf %119, %118 : vector<1x128xf32>
      %121 = math.cos %120 : vector<1x128xf32>
      %122 = vector.broadcast %8 : f32 to vector<1x128xf32>
      %123 = arith.mulf %122, %121 : vector<1x128xf32>
      %124 = vector.broadcast %9 : f32 to vector<1x128xf32>
      %125 = arith.addf %123, %124 : vector<1x128xf32>
      %126 = arith.subf %118, %125 : vector<1x128xf32>
      %127 = vector.broadcast %12 : f32 to vector<1x128xf32>
      %128 = arith.mulf %127, %126 : vector<1x128xf32>
      %c3_i32_15 = arith.constant 3 : i32
      %129 = vector.broadcast %c3_i32_15 : i32 to vector<8x128xi32>
      %130 = arith.cmpi eq, %13, %129 : vector<8x128xi32>
      %131 = vector.broadcast %10 : f32 to vector<1x128xf32>
      %132 = arith.mulf %131, %125 : vector<1x128xf32>
      %133 = vector.broadcast %11 : f32 to vector<1x128xf32>
      %134 = arith.addf %132, %133 : vector<1x128xf32>
      %135 = vector.shape_cast %134 : vector<1x128xf32> to vector<1x128xf32>
      %136 = vector.broadcast %135 : vector<1x128xf32> to vector<8x128xf32>
      %137 = arith.select %130, %136, %116 : vector<8x128xi1>, vector<8x128xf32>
      %138 = vector.extract_strided_slice %52 {offsets = [4, 0], sizes = [1, 128], strides = [1, 1]} : vector<8x128xf32> to vector<1x128xf32>
      %139 = arith.addf %138, %128 : vector<1x128xf32>
      %cst_16 = arith.constant 3.14159274 : f32
      %140 = vector.broadcast %cst_16 : f32 to vector<1x128xf32>
      %141 = arith.mulf %140, %139 : vector<1x128xf32>
      %142 = math.cos %141 : vector<1x128xf32>
      %143 = vector.broadcast %8 : f32 to vector<1x128xf32>
      %144 = arith.mulf %143, %142 : vector<1x128xf32>
      %145 = vector.broadcast %9 : f32 to vector<1x128xf32>
      %146 = arith.addf %144, %145 : vector<1x128xf32>
      %147 = arith.subf %139, %146 : vector<1x128xf32>
      %148 = vector.broadcast %12 : f32 to vector<1x128xf32>
      %149 = arith.mulf %148, %147 : vector<1x128xf32>
      %c4_i32 = arith.constant 4 : i32
      %150 = vector.broadcast %c4_i32 : i32 to vector<8x128xi32>
      %151 = arith.cmpi eq, %13, %150 : vector<8x128xi32>
      %152 = vector.broadcast %10 : f32 to vector<1x128xf32>
      %153 = arith.mulf %152, %146 : vector<1x128xf32>
      %154 = vector.broadcast %11 : f32 to vector<1x128xf32>
      %155 = arith.addf %153, %154 : vector<1x128xf32>
      %156 = vector.shape_cast %155 : vector<1x128xf32> to vector<1x128xf32>
      %157 = vector.broadcast %156 : vector<1x128xf32> to vector<8x128xf32>
      %158 = arith.select %151, %157, %137 : vector<8x128xi1>, vector<8x128xf32>
      %159 = vector.extract_strided_slice %52 {offsets = [5, 0], sizes = [1, 128], strides = [1, 1]} : vector<8x128xf32> to vector<1x128xf32>
      %160 = arith.addf %159, %149 : vector<1x128xf32>
      %cst_17 = arith.constant 3.14159274 : f32
      %161 = vector.broadcast %cst_17 : f32 to vector<1x128xf32>
      %162 = arith.mulf %161, %160 : vector<1x128xf32>
      %163 = math.cos %162 : vector<1x128xf32>
      %164 = vector.broadcast %8 : f32 to vector<1x128xf32>
      %165 = arith.mulf %164, %163 : vector<1x128xf32>
      %166 = vector.broadcast %9 : f32 to vector<1x128xf32>
      %167 = arith.addf %165, %166 : vector<1x128xf32>
      %168 = arith.subf %160, %167 : vector<1x128xf32>
      %169 = vector.broadcast %12 : f32 to vector<1x128xf32>
      %170 = arith.mulf %169, %168 : vector<1x128xf32>
      %c5_i32 = arith.constant 5 : i32
      %171 = vector.broadcast %c5_i32 : i32 to vector<8x128xi32>
      %172 = arith.cmpi eq, %13, %171 : vector<8x128xi32>
      %173 = vector.broadcast %10 : f32 to vector<1x128xf32>
      %174 = arith.mulf %173, %167 : vector<1x128xf32>
      %175 = vector.broadcast %11 : f32 to vector<1x128xf32>
      %176 = arith.addf %174, %175 : vector<1x128xf32>
      %177 = vector.shape_cast %176 : vector<1x128xf32> to vector<1x128xf32>
      %178 = vector.broadcast %177 : vector<1x128xf32> to vector<8x128xf32>
      %179 = arith.select %172, %178, %158 : vector<8x128xi1>, vector<8x128xf32>
      %180 = vector.extract_strided_slice %52 {offsets = [6, 0], sizes = [1, 128], strides = [1, 1]} : vector<8x128xf32> to vector<1x128xf32>
      %181 = arith.addf %180, %170 : vector<1x128xf32>
      %cst_18 = arith.constant 3.14159274 : f32
      %182 = vector.broadcast %cst_18 : f32 to vector<1x128xf32>
      %183 = arith.mulf %182, %181 : vector<1x128xf32>
      %184 = math.cos %183 : vector<1x128xf32>
      %185 = vector.broadcast %8 : f32 to vector<1x128xf32>
      %186 = arith.mulf %185, %184 : vector<1x128xf32>
      %187 = vector.broadcast %9 : f32 to vector<1x128xf32>
      %188 = arith.addf %186, %187 : vector<1x128xf32>
      %189 = arith.subf %181, %188 : vector<1x128xf32>
      %190 = vector.broadcast %12 : f32 to vector<1x128xf32>
      %191 = arith.mulf %190, %189 : vector<1x128xf32>
      %c6_i32 = arith.constant 6 : i32
      %192 = vector.broadcast %c6_i32 : i32 to vector<8x128xi32>
      %193 = arith.cmpi eq, %13, %192 : vector<8x128xi32>
      %194 = vector.broadcast %10 : f32 to vector<1x128xf32>
      %195 = arith.mulf %194, %188 : vector<1x128xf32>
      %196 = vector.broadcast %11 : f32 to vector<1x128xf32>
      %197 = arith.addf %195, %196 : vector<1x128xf32>
      %198 = vector.shape_cast %197 : vector<1x128xf32> to vector<1x128xf32>
      %199 = vector.broadcast %198 : vector<1x128xf32> to vector<8x128xf32>
      %200 = arith.select %193, %199, %179 : vector<8x128xi1>, vector<8x128xf32>
      %201 = vector.extract_strided_slice %52 {offsets = [7, 0], sizes = [1, 128], strides = [1, 1]} : vector<8x128xf32> to vector<1x128xf32>
      %202 = arith.addf %201, %191 : vector<1x128xf32>
      %cst_19 = arith.constant 3.14159274 : f32
      %203 = vector.broadcast %cst_19 : f32 to vector<1x128xf32>
      %204 = arith.mulf %203, %202 : vector<1x128xf32>
      %205 = math.cos %204 : vector<1x128xf32>
      %206 = vector.broadcast %8 : f32 to vector<1x128xf32>
      %207 = arith.mulf %206, %205 : vector<1x128xf32>
      %208 = vector.broadcast %9 : f32 to vector<1x128xf32>
      %209 = arith.addf %207, %208 : vector<1x128xf32>
      %210 = arith.subf %202, %209 : vector<1x128xf32>
      %211 = vector.broadcast %12 : f32 to vector<1x128xf32>
      %212 = arith.mulf %211, %210 : vector<1x128xf32>
      %c7_i32 = arith.constant 7 : i32
      %213 = vector.broadcast %c7_i32 : i32 to vector<8x128xi32>
      %214 = arith.cmpi eq, %13, %213 : vector<8x128xi32>
      %215 = vector.broadcast %10 : f32 to vector<1x128xf32>
      %216 = arith.mulf %215, %209 : vector<1x128xf32>
      %217 = vector.broadcast %11 : f32 to vector<1x128xf32>
      %218 = arith.addf %216, %217 : vector<1x128xf32>
      %219 = vector.shape_cast %218 : vector<1x128xf32> to vector<1x128xf32>
      %220 = vector.broadcast %219 : vector<1x128xf32> to vector<8x128xf32>
      %221 = arith.select %214, %220, %200 : vector<8x128xi1>, vector<8x128xf32>
      %c0_20 = arith.constant 0 : index
      %222 = arith.index_cast %18 : i32 to index
      %c0_21 = arith.constant 0 : index
      %223 = vector.load %arg4[%c0_20, %222, %c0_21] : memref<1x24x128xf32, #tpu.memory_space<vmem>>, vector<1x8x128xf32>
      %224 = vector.shape_cast %223 : vector<1x8x128xf32> to vector<8x128xf32>
      %225 = vector.shape_cast %221 : vector<8x128xf32> to vector<1x8x128xf32>
      tpu.vector_store %arg4[%c0_20, %222, %c0_21], %225 {strides = array<i32>} : memref<1x24x128xf32, #tpu.memory_space<vmem>>, vector<1x8x128xf32>,
      scf.yield %212 : vector<1x128xf32>
    }
    %c3_i32_5 = arith.constant 3 : i32
    return
  }
  func.func @transform_0(%arg0: i32) -> (i32, i32, i32) {
    %c0_i32 = arith.constant 0 : i32
    %c0_i32_0 = arith.constant 0 : i32
    %c0_i32_1 = arith.constant 0 : i32
    return %arg0, %c0_i32, %c0_i32_0 : i32, i32, i32
  }
  func.func @transform_1(%arg0: i32) -> i32 {
    %c0_i32 = arith.constant 0 : i32
    %c0_i32_0 = arith.constant 0 : i32
    return %c0_i32 : i32
  }
  func.func @transform_2(%arg0: i32) -> i32 {
    %c0_i32 = arith.constant 0 : i32
    %c0_i32_0 = arith.constant 0 : i32
    return %c0_i32 : i32
  }
  func.func @transform_3(%arg0: i32) -> (i32, i32, i32) {
    %c0_i32 = arith.constant 0 : i32
    %c0_i32_0 = arith.constant 0 : i32
    %c0_i32_1 = arith.constant 0 : i32
    return %arg0, %c0_i32, %c0_i32_0 : i32, i32, i32
  }
}

</mosaic_0001>

<llo_original>
// kernel: tpu_custom_call.1
$region0: #{tpu_custom_call.1}
  #allocation0 [shape = 'u32[]', space=smem, size = 0x4, offset = 0x4, fixed_abs, tag = 'smem constant byte address 0x4 - core index']
  #allocation1 [shape = 'u32[72,128]{1,0:T(1,128)}', space=vmem, size = 0x9000, scoped, tag = 'internal scratch']
  %s0 = inlined_call_operand.hbm [shape: f32[1,32,128], index: 0, kind: input, shape index: {}]
  %s1 = inlined_call_operand.hbm [shape: f32[8], index: 1, kind: input, shape index: {}]
  %s2 = inlined_call_operand.vmem [shape: f32[5], index: 2, kind: input, shape index: {}]
  %s3 = inlined_call_operand.hbm [shape: f32[1,24,128], index: 3, kind: output, shape index: {}]
  %s4 = sld [smem:[#allocation0]]
  $region41: #{tpu_custom_call.1} parent=0
    _
  %s6 = ssub.s32 1, %s4
  %s7 = scalar_select 0, %s6, %s4
  $region1: #{tpu_custom_call.1} parent=0
    #allocation2 [shape = 'u8[16384]{0}', space=vmem, size = 0x4000, scoped, tag = 'input window, operand 0, single buffered']
    #allocation3 [shape = 's32[1]{0}', space=sflag, size = 0x4, scoped, tag = 'scoped memory for tpu_custom_call.1']
    #allocation4 [shape = 's32[1]{0}', space=sflag, size = 0x4, scoped, tag = 'scoped memory for tpu_custom_call.1']
    #allocation5 [shape = 's32[1]{0}', space=sflag, size = 0x4, scoped, tag = 'scoped memory for tpu_custom_call.1']
    #allocation6 [shape = 's32[1]{0}', space=sflag, size = 0x4, scoped, tag = 'scoped memory for tpu_custom_call.1']
    #allocation7 [shape = 'u8[512]{0}', space=smem, size = 0x200, scoped, tag = 'input window, operand 1, single buffered']
    #allocation8 [shape = 'u8[512]{0}', space=smem, size = 0x200, scoped, tag = 'input window, operand 2, single buffered']
    #allocation9 [shape = 'u8[12288]{0}', space=vmem, size = 0x3000, scoped, tag = 'output window, operand 0, single buffered']
    %8 = vsyncpa [#allocation3], 0
    %9 = vsyncpa [#allocation5], 0
    %10 = vsyncpa [#allocation6], 0
    %11 = vsyncpa [#allocation4], 0
    // Predicated region
    $region2: #{tpu_custom_call.1} parent=1 // pred_check
      _
    $region3: #{tpu_custom_call.1} parent=1 // pred_check_branch
      %13 = sbr.rel (0) target = $region5
    $region4: #{tpu_custom_call.1} parent=1 // pred_region
      %15 = vsyncadd [#allocation3], 0
      %s16 = sshll.u32 %s0, 4
      %s17 = int_to_ptr.hbm [resolvable:$true] %s16
      %s18 = sshll.u32 [#allocation2], 4
      %s19 = int_to_ptr.vmem [resolvable:$true] %s18
      %24 = dma.hbm_to_vmem [thread:$0]  %s17, 512, %s19, [#allocation3], 128, 128, 8
    $region5: #{tpu_custom_call.1} parent=1 // pred_fallthru
      _
    // Predicated region
    $region6: #{tpu_custom_call.1} parent=1 // pred_check
      _
    $region7: #{tpu_custom_call.1} parent=1 // pred_check_branch
      %26 = sbr.rel (0) target = $region9
    $region8: #{tpu_custom_call.1} parent=1 // pred_region
      %28 = vsyncadd [#allocation5], 0
      %s30 = sshll.u32 %s1, 4
      %s31 = int_to_ptr.hbm [resolvable:$true] %s30
      %33 = dma.hbm_to_smem %s31, 16, [#allocation7], [#allocation5]
    $region9: #{tpu_custom_call.1} parent=1 // pred_fallthru
      _
    // Predicated region
    $region10: #{tpu_custom_call.1} parent=1 // pred_check
      _
    $region11: #{tpu_custom_call.1} parent=1 // pred_check_branch
      %35 = sbr.rel (0) target = $region13
    $region12: #{tpu_custom_call.1} parent=1 // pred_region
      %37 = vsyncadd [#allocation6], 0
      %s39 = sshll.u32 %s2, 4
      %s40 = int_to_ptr.vmem [resolvable:$true] %s39
      %42 = dma.vmem_to_smem %s40, 16, [#allocation8], [#allocation6]
    $region13: #{tpu_custom_call.1} parent=1 // pred_fallthru
      _
    // Predicated region
    $region14: #{tpu_custom_call.1} parent=1 // pred_check
      _
    $region15: #{tpu_custom_call.1} parent=1 // pred_check_branch
      %44 = sbr.rel (0) target = $region17
    $region16: #{tpu_custom_call.1} parent=1 // pred_region
      %46 = dma.done [#allocation3], 512
    $region17: #{tpu_custom_call.1} parent=1 // pred_fallthru
      _
    // Predicated region
    $region18: #{tpu_custom_call.1} parent=1 // pred_check
      _
    $region19: #{tpu_custom_call.1} parent=1 // pred_check_branch
      %48 = sbr.rel (0) target = $region21
    $region20: #{tpu_custom_call.1} parent=1 // pred_region
      %50 = dma.done [#allocation5], 16
    $region21: #{tpu_custom_call.1} parent=1 // pred_fallthru
      _
    // Predicated region
    $region22: #{tpu_custom_call.1} parent=1 // pred_check
      _
    $region23: #{tpu_custom_call.1} parent=1 // pred_check_branch
      %52 = sbr.rel (0) target = $region25
    $region24: #{tpu_custom_call.1} parent=1 // pred_region
      %54 = dma.done [#allocation6], 16
    $region25: #{tpu_custom_call.1} parent=1 // pred_fallthru
      _
    %55 = sfence
    %s56 = sld [smem:[#allocation7]]
    %s57 = sld [smem:[#allocation7 + $0x1]]
    %s58 = sld [smem:[#allocation7 + $0x2]]
    %s59 = sld [smem:[#allocation7 + $0x3]]
    %s60 = sld [smem:[#allocation7 + $0x4]]
    %s61 = sld [smem:[#allocation7 + $0x5]]
    %s62 = sld [smem:[#allocation7 + $0x6]]
    %s63 = sld [smem:[#allocation7 + $0x7]]
    %s64 = sld [smem:[#allocation8]]
    %s65 = sld [smem:[#allocation8 + $0x1]]
    %s66 = sld [smem:[#allocation8 + $0x2]]
    %s67 = sld [smem:[#allocation8 + $0x3]]
    %s68 = sld [smem:[#allocation8 + $0x4]]
    %v69 = vlaneseq
    %v70 = vshrl.u32 %v69, 7
    loop: start=0, step=1, limit=3
    $region26: #{tpu_custom_call.1} parent=1 // loop_pre_header
      _
    $region27: #{tpu_custom_call.1} parent=1 // loop_header
      %s72 = sphi 0, %s76
      %p73 = scmp.ge.s32.totalorder %s72, 3
      %v77 = vphi 0.0, %v1504
    $region28: #{tpu_custom_call.1} parent=1 // loop_header_branch
      %75 = sbr.rel (%p73) target = $region32
    $region29: #{tpu_custom_call.1} parent=1 // loop_body
      %s78 = smul.u32 %s72, 8
      %s79 = scalar_lea.vmem [#allocation2], %s78
      %v80 = vld [vmem:[%s79] sm:$0xff]
      %v81 = vld [vmem:[%s79 + $0x8] sm:$0xff]
      %v82 = vstv %s56
      %v83 = vmul.f32 %v82, %v80
      %v84 = vstv %s57
      %v85 = vmul.f32 %v84, %v80
      %v86 = vmul.f32 %v84, %v81
      %vm89 = vcmask 1046528
      %v90 = vrot.slane %v85, 1
      %v91 = vrot.slane %v86, 1
      %v92 = vsel %vm89, %v90, %v91
      %v94 = vadd.f32 %v83, %v92
      %v95 = vstv %s58
      %v96 = vmul.f32 %v95, %v80
      %v97 = vmul.f32 %v95, %v81
      %vm100 = vcmask 1045504
      %v101 = vrot.slane %v96, 2
      %v102 = vrot.slane %v97, 2
      %v103 = vsel %vm100, %v101, %v102
      %v105 = vadd.f32 %v94, %v103
      %v106 = vstv %s59
      %v107 = vmul.f32 %v106, %v80
      %v108 = vmul.f32 %v106, %v81
      %vm111 = vcmask 1044480
      %v112 = vrot.slane %v107, 3
      %v113 = vrot.slane %v108, 3
      %v114 = vsel %vm111, %v112, %v113
      %v116 = vadd.f32 %v105, %v114
      %v117 = vstv %s60
      %v118 = vmul.f32 %v117, %v80
      %v119 = vmul.f32 %v117, %v81
      %vm122 = vcmask 1043456
      %v123 = vrot.slane %v118, 4
      %v124 = vrot.slane %v119, 4
      %v125 = vsel %vm122, %v123, %v124
      %v127 = vadd.f32 %v116, %v125
      %v128 = vstv %s61
      %v129 = vmul.f32 %v128, %v80
      %v130 = vmul.f32 %v128, %v81
      %vm133 = vcmask 1042432
      %v134 = vrot.slane %v129, 5
      %v135 = vrot.slane %v130, 5
      %v136 = vsel %vm133, %v134, %v135
      %v138 = vadd.f32 %v127, %v136
      %v139 = vstv %s62
      %v140 = vmul.f32 %v139, %v80
      %v141 = vmul.f32 %v139, %v81
      %vm144 = vcmask 1041408
      %v145 = vrot.slane %v140, 6
      %v146 = vrot.slane %v141, 6
      %v147 = vsel %vm144, %v145, %v146
      %v149 = vadd.f32 %v138, %v147
      %v150 = vstv %s63
      %v151 = vmul.f32 %v150, %v80
      %v152 = vmul.f32 %v150, %v81
      %vm155 = vcmask 1040384
      %v156 = vrot.slane %v151, 7
      %v157 = vrot.slane %v152, 7
      %v158 = vsel %vm155, %v156, %v157
      %v160 = vadd.f32 %v149, %v158
      %v162 = vrot.slane %v77, 7
      %v164 = vadd.f32 %v160, %v162
      %v165 = vmul.f32 %v164, 3.1415927
      %v166 = vand.u32 2147483647, %v165
      %vm167 = vcmp.le.f32.partialorder %v166, 0.7853982
      %vm168 = vcmp.lt.s32.totalorder %v165, 0
      %v169 = vand.u32 %v165, 2139095040
      %v170 = vshrl.u32 %v169, 23
      %v171 = vsub.s32 %v170, 127
      %v172 = vand.u32 2147483647, %v165
      %v173 = vand.u32 %v172, 8388607
      %v174 = vor.u32 %v173, 8388608
      %v175 = vsub.s32 0, %v174
      %v176 = vadd.s32 %v171, 1
      %vm177 = vcmp.gt.s32.totalorder %v176, 0
      %v178 = vsel %vm177, %v176, 0
      %v179 = vshrl.u32 %v178, 5
      %v180 = vand.u32 %v178, 31
      %v181 = vsub.s32 32, %v180
      %v182 = vshrl.u32 683565275, %v181
      %v183 = vshll.u32 683565275, %v180
      %v184 = vshrl.u32 2475754826, %v181
      %v185 = vor.u32 %v183, %v184
      %v186 = vshll.u32 2475754826, %v180
      %v187 = vshrl.u32 2131351028, %v181
      %v188 = vor.u32 %v186, %v187
      %v189 = vshll.u32 2131351028, %v180
      %v190 = vshrl.u32 2102212464, %v181
      %v191 = vor.u32 %v189, %v190
      %v192 = vshll.u32 2102212464, %v180
      %v193 = vshrl.u32 920167782, %v181
      %v194 = vor.u32 %v192, %v193
      %v195 = vshll.u32 920167782, %v180
      %v196 = vshrl.u32 1326507024, %v181
      %v197 = vor.u32 %v195, %v196
      %vm198 = vcmp.lt.s32.totalorder %v179, 1
      %vm199 = vcmp.lt.s32.totalorder %v179, 2
      %vm200 = vcmp.lt.s32.totalorder %v179, 3
      %vm201 = vcmp.lt.s32.totalorder %v179, 4
      %v202 = vsel %vm198, %v182, %v185
      %v203 = vsel %vm201, %v191, 2102212464
      %v204 = vsel %vm200, %v188, %v203
      %v205 = vsel %vm199, %v202, %v204
      %v206 = vsel %vm198, %v185, %v188
      %v207 = vsel %vm201, %v194, 920167782
      %v208 = vsel %vm200, %v191, %v207
      %v209 = vsel %vm199, %v206, %v208
      %v210 = vsel %vm198, %v188, %v191
      %v211 = vsel %vm201, %v197, 1326507024
      %v212 = vsel %vm200, %v194, %v211
      %v213 = vsel %vm199, %v210, %v212
      %v214 = vshll.u32 %v174, 8
      %v215 = vand.u32 %v214, 65535
      %v216 = vshrl.u32 %v214, 16
      %v217 = vand.u32 %v213, 65535
      %v218 = vshrl.u32 %v213, 16
      %v219 = vmul.u32 %v215, %v217
      %v220 = vmul.u32 %v215, %v218
      %v221 = vmul.u32 %v216, %v217
      %v222 = vmul.u32 %v216, %v218
      %v223 = vshll.u32 %v220, 16
      %v224 = vshrl.u32 %v220, 16
      %v225 = vshll.u32 %v221, 16
      %v226 = vshrl.u32 %v221, 16
      %vm227 = vc.u32 %v219, %v223
      %v228 = vsel %vm227, 1, 0
      %v229 = vadd.s32 %v219, %v223
      %v230 = vadd.s32 %v222, %v228
      %vm231 = vc.u32 %v229, %v225
      %v232 = vsel %vm231, 1, 0
      %v233 = vadd.s32 %v229, %v225
      %v234 = vadd.s32 %v230, %v232
      %v235 = vadd.s32 %v234, %v224
      %v236 = vadd.s32 %v235, %v226
      %v237 = vand.u32 %v214, 65535
      %v238 = vshrl.u32 %v214, 16
      %v239 = vand.u32 %v209, 65535
      %v240 = vshrl.u32 %v209, 16
      %v241 = vmul.u32 %v237, %v239
      %v242 = vmul.u32 %v237, %v240
      %v243 = vmul.u32 %v238, %v239
      %v244 = vmul.u32 %v238, %v240
      %v245 = vshll.u32 %v242, 16
      %v246 = vshrl.u32 %v242, 16
      %v247 = vshll.u32 %v243, 16
      %v248 = vshrl.u32 %v243, 16
      %vm249 = vc.u32 %v241, %v245
      %v250 = vsel %vm249, 1, 0
      %v251 = vadd.s32 %v241, %v245
      %v252 = vadd.s32 %v244, %v250
      %vm253 = vc.u32 %v251, %v247
      %v254 = vsel %vm253, 1, 0
      %v255 = vadd.s32 %v251, %v247
      %v256 = vadd.s32 %v252, %v254
      %v257 = vadd.s32 %v256, %v246
      %v258 = vadd.s32 %v257, %v248
      %v259 = vmul.u32 %v214, %v205
      %v260 = vadd.s32 %v236, %v255
      %vm261 = vc.u32 %v236, %v255
      %v262 = vadd.s32 %v258, 1
      %v263 = vsel %vm261, %v262, %v258
      %v264 = vadd.s32 %v259, %v263
      %v265 = vadd.s32 %v264, 536870912
      %v266 = vshrl.u32 %v265, 30
      %v267 = vshll.u32 %v266, 30
      %v268 = vsub.s32 %v264, %v267
      %vm269 = vcmp.lt.s32.totalorder %v268, 0
      %v270 = vsub.s32 0, %v268
      %v271 = vsel %vm269, %v270, %v268
      %v272 = vclz %v271
      %v273 = vsub.s32 %v272, 2
      %vm274 = vcmp.gt.s32.totalorder 0, %v273
      %v275 = vsel %vm274, 0, %v273
      %v276 = vsub.s32 32, %v275
      %v277 = vshll.u32 %v268, %v275
      %v278 = vshrl.u32 %v260, %v276
      %v279 = vor.u32 %v277, %v278
      %v280 = vsub.s32 4294967266, %v275
      %v281 = vadd.s32 %v280, 127
      %v282 = vshll.u32 %v281, 23
      %v283 = vor.u32 4788187, %v282
      %v284 = vand.u32 2147483647, %v283
      %v286 = vcvt.s32.f32 %v279
      %v287 = vmul.f32 %v286, %v284
      %v288 = vxor.u32 %v287, 2147483648
      %v289 = vsel %vm168, %v288, %v287
      %v290 = vsub.s32 4, %v266
      %v291 = vsel %vm168, %v290, %v266
      %v292 = vsel %vm167, %v165, %v289
      %v293 = vsel %vm167, 0, %v291
      %v294 = vmul.f32 %v292, %v292
      %v295 = vmul.f32 %v294, -0.001358992
      %v296 = vadd.f32 %v295, 0.041655596
      %v297 = vmul.f32 %v294, %v296
      %v298 = vadd.f32 %v297, -0.4999988
      %v299 = vmul.f32 %v294, %v298
      %v300 = vadd.f32 1.0, %v299
      %v301 = vmul.f32 %v292, %v292
      %v302 = vmul.f32 %v301, -0.00019511016
      %v303 = vadd.f32 %v302, 0.008332121
      %v304 = vmul.f32 %v301, %v303
      %v305 = vadd.f32 %v304, -0.16666654
      %v306 = vmul.f32 %v301, %v305
      %v307 = vadd.f32 %v306, 1.0
      %v308 = vmul.f32 %v307, %v292
      %vm309 = vweird.f32 %v165
      %v310 = vand.u32 %v293, 3
      %vm311 = vcmp.lt.s32.totalorder %v310, 2
      %vm312 = vcmp.eq.s32.totalorder %v310, 0
      %v313 = vxor.u32 %v308, 2147483648
      %v314 = vsel %vm312, %v300, %v313
      %vm315 = vcmp.eq.s32.totalorder %v310, 2
      %v316 = vxor.u32 %v300, 2147483648
      %v317 = vsel %vm315, %v316, %v308
      %v318 = vsel %vm311, %v314, %v317
      %v319 = vsel %vm309, nan, %v318
      %v320 = vstv %s64
      %v321 = vmul.f32 %v320, %v319
      %v322 = vstv %s65
      %v323 = vadd.f32 %v321, %v322
      %v324 = vsub.f32 %v164, %v323
      %v325 = vstv %s68
      %v326 = vmul.f32 %v325, %v324
      %vm327 = vcmp.eq.s32.totalorder %v70, 0
      %v328 = vstv %s66
      %v329 = vmul.f32 %v328, %v323
      %v330 = vstv %s67
      %v331 = vadd.f32 %v329, %v330
      %v332 = vperm.slane %v331, 0
      %v333 = vsel %vm327, %v332, 0.0
      %v335 = vrot.slane %v326, 7
      %v337 = vadd.f32 %v160, %v335
      %v338 = vmul.f32 %v337, 3.1415927
      %v339 = vand.u32 2147483647, %v338
      %vm340 = vcmp.le.f32.partialorder %v339, 0.7853982
      %vm341 = vcmp.lt.s32.totalorder %v338, 0
      %v342 = vand.u32 %v338, 2139095040
      %v343 = vshrl.u32 %v342, 23
      %v344 = vsub.s32 %v343, 127
      %v345 = vand.u32 2147483647, %v338
      %v346 = vand.u32 %v345, 8388607
      %v347 = vor.u32 %v346, 8388608
      %v348 = vsub.s32 0, %v347
      %v349 = vadd.s32 %v344, 1
      %vm350 = vcmp.gt.s32.totalorder %v349, 0
      %v351 = vsel %vm350, %v349, 0
      %v352 = vshrl.u32 %v351, 5
      %v353 = vand.u32 %v351, 31
      %v354 = vsub.s32 32, %v353
      %v355 = vshrl.u32 683565275, %v354
      %v356 = vshll.u32 683565275, %v353
      %v357 = vshrl.u32 2475754826, %v354
      %v358 = vor.u32 %v356, %v357
      %v359 = vshll.u32 2475754826, %v353
      %v360 = vshrl.u32 2131351028, %v354
      %v361 = vor.u32 %v359, %v360
      %v362 = vshll.u32 2131351028, %v353
      %v363 = vshrl.u32 2102212464, %v354
      %v364 = vor.u32 %v362, %v363
      %v365 = vshll.u32 2102212464, %v353
      %v366 = vshrl.u32 920167782, %v354
      %v367 = vor.u32 %v365, %v366
      %v368 = vshll.u32 920167782, %v353
      %v369 = vshrl.u32 1326507024, %v354
      %v370 = vor.u32 %v368, %v369
      %vm371 = vcmp.lt.s32.totalorder %v352, 1
      %vm372 = vcmp.lt.s32.totalorder %v352, 2
      %vm373 = vcmp.lt.s32.totalorder %v352, 3
      %vm374 = vcmp.lt.s32.totalorder %v352, 4
      %v375 = vsel %vm371, %v355, %v358
      %v376 = vsel %vm374, %v364, 2102212464
      %v377 = vsel %vm373, %v361, %v376
      %v378 = vsel %vm372, %v375, %v377
      %v379 = vsel %vm371, %v358, %v361
      %v380 = vsel %vm374, %v367, 920167782
      %v381 = vsel %vm373, %v364, %v380
      %v382 = vsel %vm372, %v379, %v381
      %v383 = vsel %vm371, %v361, %v364
      %v384 = vsel %vm374, %v370, 1326507024
      %v385 = vsel %vm373, %v367, %v384
      %v386 = vsel %vm372, %v383, %v385
      %v387 = vshll.u32 %v347, 8
      %v388 = vand.u32 %v387, 65535
      %v389 = vshrl.u32 %v387, 16
      %v390 = vand.u32 %v386, 65535
      %v391 = vshrl.u32 %v386, 16
      %v392 = vmul.u32 %v388, %v390
      %v393 = vmul.u32 %v388, %v391
      %v394 = vmul.u32 %v389, %v390
      %v395 = vmul.u32 %v389, %v391
      %v396 = vshll.u32 %v393, 16
      %v397 = vshrl.u32 %v393, 16
      %v398 = vshll.u32 %v394, 16
      %v399 = vshrl.u32 %v394, 16
      %vm400 = vc.u32 %v392, %v396
      %v401 = vsel %vm400, 1, 0
      %v402 = vadd.s32 %v392, %v396
      %v403 = vadd.s32 %v395, %v401
      %vm404 = vc.u32 %v402, %v398
      %v405 = vsel %vm404, 1, 0
      %v406 = vadd.s32 %v402, %v398
      %v407 = vadd.s32 %v403, %v405
      %v408 = vadd.s32 %v407, %v397
      %v409 = vadd.s32 %v408, %v399
      %v410 = vand.u32 %v387, 65535
      %v411 = vshrl.u32 %v387, 16
      %v412 = vand.u32 %v382, 65535
      %v413 = vshrl.u32 %v382, 16
      %v414 = vmul.u32 %v410, %v412
      %v415 = vmul.u32 %v410, %v413
      %v416 = vmul.u32 %v411, %v412
      %v417 = vmul.u32 %v411, %v413
      %v418 = vshll.u32 %v415, 16
      %v419 = vshrl.u32 %v415, 16
      %v420 = vshll.u32 %v416, 16
      %v421 = vshrl.u32 %v416, 16
      %vm422 = vc.u32 %v414, %v418
      %v423 = vsel %vm422, 1, 0
      %v424 = vadd.s32 %v414, %v418
      %v425 = vadd.s32 %v417, %v423
      %vm426 = vc.u32 %v424, %v420
      %v427 = vsel %vm426, 1, 0
      %v428 = vadd.s32 %v424, %v420
      %v429 = vadd.s32 %v425, %v427
      %v430 = vadd.s32 %v429, %v419
      %v431 = vadd.s32 %v430, %v421
      %v432 = vmul.u32 %v387, %v378
      %v433 = vadd.s32 %v409, %v428
      %vm434 = vc.u32 %v409, %v428
      %v435 = vadd.s32 %v431, 1
      %v436 = vsel %vm434, %v435, %v431
      %v437 = vadd.s32 %v432, %v436
      %v438 = vadd.s32 %v437, 536870912
      %v439 = vshrl.u32 %v438, 30
      %v440 = vshll.u32 %v439, 30
      %v441 = vsub.s32 %v437, %v440
      %vm442 = vcmp.lt.s32.totalorder %v441, 0
      %v443 = vsub.s32 0, %v441
      %v444 = vsel %vm442, %v443, %v441
      %v445 = vclz %v444
      %v446 = vsub.s32 %v445, 2
      %vm447 = vcmp.gt.s32.totalorder 0, %v446
      %v448 = vsel %vm447, 0, %v446
      %v449 = vsub.s32 32, %v448
      %v450 = vshll.u32 %v441, %v448
      %v451 = vshrl.u32 %v433, %v449
      %v452 = vor.u32 %v450, %v451
      %v453 = vsub.s32 4294967266, %v448
      %v454 = vadd.s32 %v453, 127
      %v455 = vshll.u32 %v454, 23
      %v456 = vor.u32 4788187, %v455
      %v457 = vand.u32 2147483647, %v456
      %v459 = vcvt.s32.f32 %v452
      %v460 = vmul.f32 %v459, %v457
      %v461 = vxor.u32 %v460, 2147483648
      %v462 = vsel %vm341, %v461, %v460
      %v463 = vsub.s32 4, %v439
      %v464 = vsel %vm341, %v463, %v439
      %v465 = vsel %vm340, %v338, %v462
      %v466 = vsel %vm340, 0, %v464
      %v467 = vmul.f32 %v465, %v465
      %v468 = vmul.f32 %v467, -0.001358992
      %v469 = vadd.f32 %v468, 0.041655596
      %v470 = vmul.f32 %v467, %v469
      %v471 = vadd.f32 %v470, -0.4999988
      %v472 = vmul.f32 %v467, %v471
      %v473 = vadd.f32 1.0, %v472
      %v474 = vmul.f32 %v465, %v465
      %v475 = vmul.f32 %v474, -0.00019511016
      %v476 = vadd.f32 %v475, 0.008332121
      %v477 = vmul.f32 %v474, %v476
      %v478 = vadd.f32 %v477, -0.16666654
      %v479 = vmul.f32 %v474, %v478
      %v480 = vadd.f32 %v479, 1.0
      %v481 = vmul.f32 %v480, %v465
      %vm482 = vweird.f32 %v338
      %v483 = vand.u32 %v466, 3
      %vm484 = vcmp.lt.s32.totalorder %v483, 2
      %vm485 = vcmp.eq.s32.totalorder %v483, 0
      %v486 = vxor.u32 %v481, 2147483648
      %v487 = vsel %vm485, %v473, %v486
      %vm488 = vcmp.eq.s32.totalorder %v483, 2
      %v489 = vxor.u32 %v473, 2147483648
      %v490 = vsel %vm488, %v489, %v481
      %v491 = vsel %vm484, %v487, %v490
      %v492 = vsel %vm482, nan, %v491
      %v493 = vmul.f32 %v320, %v492
      %v494 = vadd.f32 %v493, %v322
      %v495 = vsub.f32 %v337, %v494
      %v496 = vmul.f32 %v325, %v495
      %vm497 = vcmp.eq.s32.totalorder %v70, 1
      %v498 = vmul.f32 %v328, %v494
      %v499 = vadd.f32 %v498, %v330
      %v500 = vperm.slane %v499, 1
      %v501 = vsel %vm497, %v500, %v333
      %v503 = vrot.slane %v496, 7
      %v505 = vadd.f32 %v160, %v503
      %v506 = vmul.f32 %v505, 3.1415927
      %v507 = vand.u32 2147483647, %v506
      %vm508 = vcmp.le.f32.partialorder %v507, 0.7853982
      %vm509 = vcmp.lt.s32.totalorder %v506, 0
      %v510 = vand.u32 %v506, 2139095040
      %v511 = vshrl.u32 %v510, 23
      %v512 = vsub.s32 %v511, 127
      %v513 = vand.u32 2147483647, %v506
      %v514 = vand.u32 %v513, 8388607
      %v515 = vor.u32 %v514, 8388608
      %v516 = vsub.s32 0, %v515
      %v517 = vadd.s32 %v512, 1
      %vm518 = vcmp.gt.s32.totalorder %v517, 0
      %v519 = vsel %vm518, %v517, 0
      %v520 = vshrl.u32 %v519, 5
      %v521 = vand.u32 %v519, 31
      %v522 = vsub.s32 32, %v521
      %v523 = vshrl.u32 683565275, %v522
      %v524 = vshll.u32 683565275, %v521
      %v525 = vshrl.u32 2475754826, %v522
      %v526 = vor.u32 %v524, %v525
      %v527 = vshll.u32 2475754826, %v521
      %v528 = vshrl.u32 2131351028, %v522
      %v529 = vor.u32 %v527, %v528
      %v530 = vshll.u32 2131351028, %v521
      %v531 = vshrl.u32 2102212464, %v522
      %v532 = vor.u32 %v530, %v531
      %v533 = vshll.u32 2102212464, %v521
      %v534 = vshrl.u32 920167782, %v522
      %v535 = vor.u32 %v533, %v534
      %v536 = vshll.u32 920167782, %v521
      %v537 = vshrl.u32 1326507024, %v522
      %v538 = vor.u32 %v536, %v537
      %vm539 = vcmp.lt.s32.totalorder %v520, 1
      %vm540 = vcmp.lt.s32.totalorder %v520, 2
      %vm541 = vcmp.lt.s32.totalorder %v520, 3
      %vm542 = vcmp.lt.s32.totalorder %v520, 4
      %v543 = vsel %vm539, %v523, %v526
      %v544 = vsel %vm542, %v532, 2102212464
      %v545 = vsel %vm541, %v529, %v544
      %v546 = vsel %vm540, %v543, %v545
      %v547 = vsel %vm539, %v526, %v529
      %v548 = vsel %vm542, %v535, 920167782
      %v549 = vsel %vm541, %v532, %v548
      %v550 = vsel %vm540, %v547, %v549
      %v551 = vsel %vm539, %v529, %v532
      %v552 = vsel %vm542, %v538, 1326507024
      %v553 = vsel %vm541, %v535, %v552
      %v554 = vsel %vm540, %v551, %v553
      %v555 = vshll.u32 %v515, 8
      %v556 = vand.u32 %v555, 65535
      %v557 = vshrl.u32 %v555, 16
      %v558 = vand.u32 %v554, 65535
      %v559 = vshrl.u32 %v554, 16
      %v560 = vmul.u32 %v556, %v558
      %v561 = vmul.u32 %v556, %v559
      %v562 = vmul.u32 %v557, %v558
      %v563 = vmul.u32 %v557, %v559
      %v564 = vshll.u32 %v561, 16
      %v565 = vshrl.u32 %v561, 16
      %v566 = vshll.u32 %v562, 16
      %v567 = vshrl.u32 %v562, 16
      %vm568 = vc.u32 %v560, %v564
      %v569 = vsel %vm568, 1, 0
      %v570 = vadd.s32 %v560, %v564
      %v571 = vadd.s32 %v563, %v569
      %vm572 = vc.u32 %v570, %v566
      %v573 = vsel %vm572, 1, 0
      %v574 = vadd.s32 %v570, %v566
      %v575 = vadd.s32 %v571, %v573
      %v576 = vadd.s32 %v575, %v565
      %v577 = vadd.s32 %v576, %v567
      %v578 = vand.u32 %v555, 65535
      %v579 = vshrl.u32 %v555, 16
      %v580 = vand.u32 %v550, 65535
      %v581 = vshrl.u32 %v550, 16
      %v582 = vmul.u32 %v578, %v580
      %v583 = vmul.u32 %v578, %v581
      %v584 = vmul.u32 %v579, %v580
      %v585 = vmul.u32 %v579, %v581
      %v586 = vshll.u32 %v583, 16
      %v587 = vshrl.u32 %v583, 16
      %v588 = vshll.u32 %v584, 16
      %v589 = vshrl.u32 %v584, 16
      %vm590 = vc.u32 %v582, %v586
      %v591 = vsel %vm590, 1, 0
      %v592 = vadd.s32 %v582, %v586
      %v593 = vadd.s32 %v585, %v591
      %vm594 = vc.u32 %v592, %v588
      %v595 = vsel %vm594, 1, 0
      %v596 = vadd.s32 %v592, %v588
      %v597 = vadd.s32 %v593, %v595
      %v598 = vadd.s32 %v597, %v587
      %v599 = vadd.s32 %v598, %v589
      %v600 = vmul.u32 %v555, %v546
      %v601 = vadd.s32 %v577, %v596
      %vm602 = vc.u32 %v577, %v596
      %v603 = vadd.s32 %v599, 1
      %v604 = vsel %vm602, %v603, %v599
      %v605 = vadd.s32 %v600, %v604
      %v606 = vadd.s32 %v605, 536870912
      %v607 = vshrl.u32 %v606, 30
      %v608 = vshll.u32 %v607, 30
      %v609 = vsub.s32 %v605, %v608
      %vm610 = vcmp.lt.s32.totalorder %v609, 0
      %v611 = vsub.s32 0, %v609
      %v612 = vsel %vm610, %v611, %v609
      %v613 = vclz %v612
      %v614 = vsub.s32 %v613, 2
      %vm615 = vcmp.gt.s32.totalorder 0, %v614
      %v616 = vsel %vm615, 0, %v614
      %v617 = vsub.s32 32, %v616
      %v618 = vshll.u32 %v609, %v616
      %v619 = vshrl.u32 %v601, %v617
      %v620 = vor.u32 %v618, %v619
      %v621 = vsub.s32 4294967266, %v616
      %v622 = vadd.s32 %v621, 127
      %v623 = vshll.u32 %v622, 23
      %v624 = vor.u32 4788187, %v623
      %v625 = vand.u32 2147483647, %v624
      %v627 = vcvt.s32.f32 %v620
      %v628 = vmul.f32 %v627, %v625
      %v629 = vxor.u32 %v628, 2147483648
      %v630 = vsel %vm509, %v629, %v628
      %v631 = vsub.s32 4, %v607
      %v632 = vsel %vm509, %v631, %v607
      %v633 = vsel %vm508, %v506, %v630
      %v634 = vsel %vm508, 0, %v632
      %v635 = vmul.f32 %v633, %v633
      %v636 = vmul.f32 %v635, -0.001358992
      %v637 = vadd.f32 %v636, 0.041655596
      %v638 = vmul.f32 %v635, %v637
      %v639 = vadd.f32 %v638, -0.4999988
      %v640 = vmul.f32 %v635, %v639
      %v641 = vadd.f32 1.0, %v640
      %v642 = vmul.f32 %v633, %v633
      %v643 = vmul.f32 %v642, -0.00019511016
      %v644 = vadd.f32 %v643, 0.008332121
      %v645 = vmul.f32 %v642, %v644
      %v646 = vadd.f32 %v645, -0.16666654
      %v647 = vmul.f32 %v642, %v646
      %v648 = vadd.f32 %v647, 1.0
      %v649 = vmul.f32 %v648, %v633
      %vm650 = vweird.f32 %v506
      %v651 = vand.u32 %v634, 3
      %vm652 = vcmp.lt.s32.totalorder %v651, 2
      %vm653 = vcmp.eq.s32.totalorder %v651, 0
      %v654 = vxor.u32 %v649, 2147483648
      %v655 = vsel %vm653, %v641, %v654
      %vm656 = vcmp.eq.s32.totalorder %v651, 2
      %v657 = vxor.u32 %v641, 2147483648
      %v658 = vsel %vm656, %v657, %v649
      %v659 = vsel %vm652, %v655, %v658
      %v660 = vsel %vm650, nan, %v659
      %v661 = vmul.f32 %v320, %v660
      %v662 = vadd.f32 %v661, %v322
      %v663 = vsub.f32 %v505, %v662
      %v664 = vmul.f32 %v325, %v663
      %vm665 = vcmp.eq.s32.totalorder %v70, 2
      %v666 = vmul.f32 %v328, %v662
      %v667 = vadd.f32 %v666, %v330
      %v668 = vperm.slane %v667, 2
      %v669 = vsel %vm665, %v668, %v501
      %v671 = vrot.slane %v664, 7
      %v673 = vadd.f32 %v160, %v671
      %v674 = vmul.f32 %v673, 3.1415927
      %v675 = vand.u32 2147483647, %v674
      %vm676 = vcmp.le.f32.partialorder %v675, 0.7853982
      %vm677 = vcmp.lt.s32.totalorder %v674, 0
      %v678 = vand.u32 %v674, 2139095040
      %v679 = vshrl.u32 %v678, 23
      %v680 = vsub.s32 %v679, 127
      %v681 = vand.u32 2147483647, %v674
      %v682 = vand.u32 %v681, 8388607
      %v683 = vor.u32 %v682, 8388608
      %v684 = vsub.s32 0, %v683
      %v685 = vadd.s32 %v680, 1
      %vm686 = vcmp.gt.s32.totalorder %v685, 0
      %v687 = vsel %vm686, %v685, 0
      %v688 = vshrl.u32 %v687, 5
      %v689 = vand.u32 %v687, 31
      %v690 = vsub.s32 32, %v689
      %v691 = vshrl.u32 683565275, %v690
      %v692 = vshll.u32 683565275, %v689
      %v693 = vshrl.u32 2475754826, %v690
      %v694 = vor.u32 %v692, %v693
      %v695 = vshll.u32 2475754826, %v689
      %v696 = vshrl.u32 2131351028, %v690
      %v697 = vor.u32 %v695, %v696
      %v698 = vshll.u32 2131351028, %v689
      %v699 = vshrl.u32 2102212464, %v690
      %v700 = vor.u32 %v698, %v699
      %v701 = vshll.u32 2102212464, %v689
      %v702 = vshrl.u32 920167782, %v690
      %v703 = vor.u32 %v701, %v702
      %v704 = vshll.u32 920167782, %v689
      %v705 = vshrl.u32 1326507024, %v690
      %v706 = vor.u32 %v704, %v705
      %vm707 = vcmp.lt.s32.totalorder %v688, 1
      %vm708 = vcmp.lt.s32.totalorder %v688, 2
      %vm709 = vcmp.lt.s32.totalorder %v688, 3
      %vm710 = vcmp.lt.s32.totalorder %v688, 4
      %v711 = vsel %vm707, %v691, %v694
      %v712 = vsel %vm710, %v700, 2102212464
      %v713 = vsel %vm709, %v697, %v712
      %v714 = vsel %vm708, %v711, %v713
      %v715 = vsel %vm707, %v694, %v697
      %v716 = vsel %vm710, %v703, 920167782
      %v717 = vsel %vm709, %v700, %v716
      %v718 = vsel %vm708, %v715, %v717
      %v719 = vsel %vm707, %v697, %v700
      %v720 = vsel %vm710, %v706, 1326507024
      %v721 = vsel %vm709, %v703, %v720
      %v722 = vsel %vm708, %v719, %v721
      %v723 = vshll.u32 %v683, 8
      %v724 = vand.u32 %v723, 65535
      %v725 = vshrl.u32 %v723, 16
      %v726 = vand.u32 %v722, 65535
      %v727 = vshrl.u32 %v722, 16
      %v728 = vmul.u32 %v724, %v726
      %v729 = vmul.u32 %v724, %v727
      %v730 = vmul.u32 %v725, %v726
      %v731 = vmul.u32 %v725, %v727
      %v732 = vshll.u32 %v729, 16
      %v733 = vshrl.u32 %v729, 16
      %v734 = vshll.u32 %v730, 16
      %v735 = vshrl.u32 %v730, 16
      %vm736 = vc.u32 %v728, %v732
      %v737 = vsel %vm736, 1, 0
      %v738 = vadd.s32 %v728, %v732
      %v739 = vadd.s32 %v731, %v737
      %vm740 = vc.u32 %v738, %v734
      %v741 = vsel %vm740, 1, 0
      %v742 = vadd.s32 %v738, %v734
      %v743 = vadd.s32 %v739, %v741
      %v744 = vadd.s32 %v743, %v733
      %v745 = vadd.s32 %v744, %v735
      %v746 = vand.u32 %v723, 65535
      %v747 = vshrl.u32 %v723, 16
      %v748 = vand.u32 %v718, 65535
      %v749 = vshrl.u32 %v718, 16
      %v750 = vmul.u32 %v746, %v748
      %v751 = vmul.u32 %v746, %v749
      %v752 = vmul.u32 %v747, %v748
      %v753 = vmul.u32 %v747, %v749
      %v754 = vshll.u32 %v751, 16
      %v755 = vshrl.u32 %v751, 16
      %v756 = vshll.u32 %v752, 16
      %v757 = vshrl.u32 %v752, 16
      %vm758 = vc.u32 %v750, %v754
      %v759 = vsel %vm758, 1, 0
      %v760 = vadd.s32 %v750, %v754
      %v761 = vadd.s32 %v753, %v759
      %vm762 = vc.u32 %v760, %v756
      %v763 = vsel %vm762, 1, 0
      %v764 = vadd.s32 %v760, %v756
      %v765 = vadd.s32 %v761, %v763
      %v766 = vadd.s32 %v765, %v755
      %v767 = vadd.s32 %v766, %v757
      %v768 = vmul.u32 %v723, %v714
      %v769 = vadd.s32 %v745, %v764
      %vm770 = vc.u32 %v745, %v764
      %v771 = vadd.s32 %v767, 1
      %v772 = vsel %vm770, %v771, %v767
      %v773 = vadd.s32 %v768, %v772
      %v774 = vadd.s32 %v773, 536870912
      %v775 = vshrl.u32 %v774, 30
      %v776 = vshll.u32 %v775, 30
      %v777 = vsub.s32 %v773, %v776
      %vm778 = vcmp.lt.s32.totalorder %v777, 0
      %v779 = vsub.s32 0, %v777
      %v780 = vsel %vm778, %v779, %v777
      %v781 = vclz %v780
      %v782 = vsub.s32 %v781, 2
      %vm783 = vcmp.gt.s32.totalorder 0, %v782
      %v784 = vsel %vm783, 0, %v782
      %v785 = vsub.s32 32, %v784
      %v786 = vshll.u32 %v777, %v784
      %v787 = vshrl.u32 %v769, %v785
      %v788 = vor.u32 %v786, %v787
      %v789 = vsub.s32 4294967266, %v784
      %v790 = vadd.s32 %v789, 127
      %v791 = vshll.u32 %v790, 23
      %v792 = vor.u32 4788187, %v791
      %v793 = vand.u32 2147483647, %v792
      %v795 = vcvt.s32.f32 %v788
      %v796 = vmul.f32 %v795, %v793
      %v797 = vxor.u32 %v796, 2147483648
      %v798 = vsel %vm677, %v797, %v796
      %v799 = vsub.s32 4, %v775
      %v800 = vsel %vm677, %v799, %v775
      %v801 = vsel %vm676, %v674, %v798
      %v802 = vsel %vm676, 0, %v800
      %v803 = vmul.f32 %v801, %v801
      %v804 = vmul.f32 %v803, -0.001358992
      %v805 = vadd.f32 %v804, 0.041655596
      %v806 = vmul.f32 %v803, %v805
      %v807 = vadd.f32 %v806, -0.4999988
      %v808 = vmul.f32 %v803, %v807
      %v809 = vadd.f32 1.0, %v808
      %v810 = vmul.f32 %v801, %v801
      %v811 = vmul.f32 %v810, -0.00019511016
      %v812 = vadd.f32 %v811, 0.008332121
      %v813 = vmul.f32 %v810, %v812
      %v814 = vadd.f32 %v813, -0.16666654
      %v815 = vmul.f32 %v810, %v814
      %v816 = vadd.f32 %v815, 1.0
      %v817 = vmul.f32 %v816, %v801
      %vm818 = vweird.f32 %v674
      %v819 = vand.u32 %v802, 3
      %vm820 = vcmp.lt.s32.totalorder %v819, 2
      %vm821 = vcmp.eq.s32.totalorder %v819, 0
      %v822 = vxor.u32 %v817, 2147483648
      %v823 = vsel %vm821, %v809, %v822
      %vm824 = vcmp.eq.s32.totalorder %v819, 2
      %v825 = vxor.u32 %v809, 2147483648
      %v826 = vsel %vm824, %v825, %v817
      %v827 = vsel %vm820, %v823, %v826
      %v828 = vsel %vm818, nan, %v827
      %v829 = vmul.f32 %v320, %v828
      %v830 = vadd.f32 %v829, %v322
      %v831 = vsub.f32 %v673, %v830
      %v832 = vmul.f32 %v325, %v831
      %vm833 = vcmp.eq.s32.totalorder %v70, 3
      %v834 = vmul.f32 %v328, %v830
      %v835 = vadd.f32 %v834, %v330
      %v836 = vperm.slane %v835, 3
      %v837 = vsel %vm833, %v836, %v669
      %v839 = vrot.slane %v832, 7
      %v841 = vadd.f32 %v160, %v839
      %v842 = vmul.f32 %v841, 3.1415927
      %v843 = vand.u32 2147483647, %v842
      %vm844 = vcmp.le.f32.partialorder %v843, 0.7853982
      %vm845 = vcmp.lt.s32.totalorder %v842, 0
      %v846 = vand.u32 %v842, 2139095040
      %v847 = vshrl.u32 %v846, 23
      %v848 = vsub.s32 %v847, 127
      %v849 = vand.u32 2147483647, %v842
      %v850 = vand.u32 %v849, 8388607
      %v851 = vor.u32 %v850, 8388608
      %v852 = vsub.s32 0, %v851
      %v853 = vadd.s32 %v848, 1
      %vm854 = vcmp.gt.s32.totalorder %v853, 0
      %v855 = vsel %vm854, %v853, 0
      %v856 = vshrl.u32 %v855, 5
      %v857 = vand.u32 %v855, 31
      %v858 = vsub.s32 32, %v857
      %v859 = vshrl.u32 683565275, %v858
      %v860 = vshll.u32 683565275, %v857
      %v861 = vshrl.u32 2475754826, %v858
      %v862 = vor.u32 %v860, %v861
      %v863 = vshll.u32 2475754826, %v857
      %v864 = vshrl.u32 2131351028, %v858
      %v865 = vor.u32 %v863, %v864
      %v866 = vshll.u32 2131351028, %v857
      %v867 = vshrl.u32 2102212464, %v858
      %v868 = vor.u32 %v866, %v867
      %v869 = vshll.u32 2102212464, %v857
      %v870 = vshrl.u32 920167782, %v858
      %v871 = vor.u32 %v869, %v870
      %v872 = vshll.u32 920167782, %v857
      %v873 = vshrl.u32 1326507024, %v858
      %v874 = vor.u32 %v872, %v873
      %vm875 = vcmp.lt.s32.totalorder %v856, 1
      %vm876 = vcmp.lt.s32.totalorder %v856, 2
      %vm877 = vcmp.lt.s32.totalorder %v856, 3
      %vm878 = vcmp.lt.s32.totalorder %v856, 4
      %v879 = vsel %vm875, %v859, %v862
      %v880 = vsel %vm878, %v868, 2102212464
      %v881 = vsel %vm877, %v865, %v880
      %v882 = vsel %vm876, %v879, %v881
      %v883 = vsel %vm875, %v862, %v865
      %v884 = vsel %vm878, %v871, 920167782
      %v885 = vsel %vm877, %v868, %v884
      %v886 = vsel %vm876, %v883, %v885
      %v887 = vsel %vm875, %v865, %v868
      %v888 = vsel %vm878, %v874, 1326507024
      %v889 = vsel %vm877, %v871, %v888
      %v890 = vsel %vm876, %v887, %v889
      %v891 = vshll.u32 %v851, 8
      %v892 = vand.u32 %v891, 65535
      %v893 = vshrl.u32 %v891, 16
      %v894 = vand.u32 %v890, 65535
      %v895 = vshrl.u32 %v890, 16
      %v896 = vmul.u32 %v892, %v894
      %v897 = vmul.u32 %v892, %v895
      %v898 = vmul.u32 %v893, %v894
      %v899 = vmul.u32 %v893, %v895
      %v900 = vshll.u32 %v897, 16
      %v901 = vshrl.u32 %v897, 16
      %v902 = vshll.u32 %v898, 16
      %v903 = vshrl.u32 %v898, 16
      %vm904 = vc.u32 %v896, %v900
      %v905 = vsel %vm904, 1, 0
      %v906 = vadd.s32 %v896, %v900
      %v907 = vadd.s32 %v899, %v905
      %vm908 = vc.u32 %v906, %v902
      %v909 = vsel %vm908, 1, 0
      %v910 = vadd.s32 %v906, %v902
      %v911 = vadd.s32 %v907, %v909
      %v912 = vadd.s32 %v911, %v901
      %v913 = vadd.s32 %v912, %v903
      %v914 = vand.u32 %v891, 65535
      %v915 = vshrl.u32 %v891, 16
      %v916 = vand.u32 %v886, 65535
      %v917 = vshrl.u32 %v886, 16
      %v918 = vmul.u32 %v914, %v916
      %v919 = vmul.u32 %v914, %v917
      %v920 = vmul.u32 %v915, %v916
      %v921 = vmul.u32 %v915, %v917
      %v922 = vshll.u32 %v919, 16
      %v923 = vshrl.u32 %v919, 16
      %v924 = vshll.u32 %v920, 16
      %v925 = vshrl.u32 %v920, 16
      %vm926 = vc.u32 %v918, %v922
      %v927 = vsel %vm926, 1, 0
      %v928 = vadd.s32 %v918, %v922
      %v929 = vadd.s32 %v921, %v927
      %vm930 = vc.u32 %v928, %v924
      %v931 = vsel %vm930, 1, 0
      %v932 = vadd.s32 %v928, %v924
      %v933 = vadd.s32 %v929, %v931
      %v934 = vadd.s32 %v933, %v923
      %v935 = vadd.s32 %v934, %v925
      %v936 = vmul.u32 %v891, %v882
      %v937 = vadd.s32 %v913, %v932
      %vm938 = vc.u32 %v913, %v932
      %v939 = vadd.s32 %v935, 1
      %v940 = vsel %vm938, %v939, %v935
      %v941 = vadd.s32 %v936, %v940
      %v942 = vadd.s32 %v941, 536870912
      %v943 = vshrl.u32 %v942, 30
      %v944 = vshll.u32 %v943, 30
      %v945 = vsub.s32 %v941, %v944
      %vm946 = vcmp.lt.s32.totalorder %v945, 0
      %v947 = vsub.s32 0, %v945
      %v948 = vsel %vm946, %v947, %v945
      %v949 = vclz %v948
      %v950 = vsub.s32 %v949, 2
      %vm951 = vcmp.gt.s32.totalorder 0, %v950
      %v952 = vsel %vm951, 0, %v950
      %v953 = vsub.s32 32, %v952
      %v954 = vshll.u32 %v945, %v952
      %v955 = vshrl.u32 %v937, %v953
      %v956 = vor.u32 %v954, %v955
      %v957 = vsub.s32 4294967266, %v952
      %v958 = vadd.s32 %v957, 127
      %v959 = vshll.u32 %v958, 23
      %v960 = vor.u32 4788187, %v959
      %v961 = vand.u32 2147483647, %v960
      %v963 = vcvt.s32.f32 %v956
      %v964 = vmul.f32 %v963, %v961
      %v965 = vxor.u32 %v964, 2147483648
      %v966 = vsel %vm845, %v965, %v964
      %v967 = vsub.s32 4, %v943
      %v968 = vsel %vm845, %v967, %v943
      %v969 = vsel %vm844, %v842, %v966
      %v970 = vsel %vm844, 0, %v968
      %v971 = vmul.f32 %v969, %v969
      %v972 = vmul.f32 %v971, -0.001358992
      %v973 = vadd.f32 %v972, 0.041655596
      %v974 = vmul.f32 %v971, %v973
      %v975 = vadd.f32 %v974, -0.4999988
      %v976 = vmul.f32 %v971, %v975
      %v977 = vadd.f32 1.0, %v976
      %v978 = vmul.f32 %v969, %v969
      %v979 = vmul.f32 %v978, -0.00019511016
      %v980 = vadd.f32 %v979, 0.008332121
      %v981 = vmul.f32 %v978, %v980
      %v982 = vadd.f32 %v981, -0.16666654
      %v983 = vmul.f32 %v978, %v982
      %v984 = vadd.f32 %v983, 1.0
      %v985 = vmul.f32 %v984, %v969
      %vm986 = vweird.f32 %v842
      %v987 = vand.u32 %v970, 3
      %vm988 = vcmp.lt.s32.totalorder %v987, 2
      %vm989 = vcmp.eq.s32.totalorder %v987, 0
      %v990 = vxor.u32 %v985, 2147483648
      %v991 = vsel %vm989, %v977, %v990
      %vm992 = vcmp.eq.s32.totalorder %v987, 2
      %v993 = vxor.u32 %v977, 2147483648
      %v994 = vsel %vm992, %v993, %v985
      %v995 = vsel %vm988, %v991, %v994
      %v996 = vsel %vm986, nan, %v995
      %v997 = vmul.f32 %v320, %v996
      %v998 = vadd.f32 %v997, %v322
      %v999 = vsub.f32 %v841, %v998
      %v1000 = vmul.f32 %v325, %v999
      %vm1001 = vcmp.eq.s32.totalorder %v70, 4
      %v1002 = vmul.f32 %v328, %v998
      %v1003 = vadd.f32 %v1002, %v330
      %v1004 = vperm.slane %v1003, 4
      %v1005 = vsel %vm1001, %v1004, %v837
      %v1007 = vrot.slane %v1000, 7
      %v1009 = vadd.f32 %v160, %v1007
      %v1010 = vmul.f32 %v1009, 3.1415927
      %v1011 = vand.u32 2147483647, %v1010
      %vm1012 = vcmp.le.f32.partialorder %v1011, 0.7853982
      %vm1013 = vcmp.lt.s32.totalorder %v1010, 0
      %v1014 = vand.u32 %v1010, 2139095040
      %v1015 = vshrl.u32 %v1014, 23
      %v1016 = vsub.s32 %v1015, 127
      %v1017 = vand.u32 2147483647, %v1010
      %v1018 = vand.u32 %v1017, 8388607
      %v1019 = vor.u32 %v1018, 8388608
      %v1020 = vsub.s32 0, %v1019
      %v1021 = vadd.s32 %v1016, 1
      %vm1022 = vcmp.gt.s32.totalorder %v1021, 0
      %v1023 = vsel %vm1022, %v1021, 0
      %v1024 = vshrl.u32 %v1023, 5
      %v1025 = vand.u32 %v1023, 31
      %v1026 = vsub.s32 32, %v1025
      %v1027 = vshrl.u32 683565275, %v1026
      %v1028 = vshll.u32 683565275, %v1025
      %v1029 = vshrl.u32 2475754826, %v1026
      %v1030 = vor.u32 %v1028, %v1029
      %v1031 = vshll.u32 2475754826, %v1025
      %v1032 = vshrl.u32 2131351028, %v1026
      %v1033 = vor.u32 %v1031, %v1032
      %v1034 = vshll.u32 2131351028, %v1025
      %v1035 = vshrl.u32 2102212464, %v1026
      %v1036 = vor.u32 %v1034, %v1035
      %v1037 = vshll.u32 2102212464, %v1025
      %v1038 = vshrl.u32 920167782, %v1026
      %v1039 = vor.u32 %v1037, %v1038
      %v1040 = vshll.u32 920167782, %v1025
      %v1041 = vshrl.u32 1326507024, %v1026
      %v1042 = vor.u32 %v1040, %v1041
      %vm1043 = vcmp.lt.s32.totalorder %v1024, 1
      %vm1044 = vcmp.lt.s32.totalorder %v1024, 2
      %vm1045 = vcmp.lt.s32.totalorder %v1024, 3
      %vm1046 = vcmp.lt.s32.totalorder %v1024, 4
      %v1047 = vsel %vm1043, %v1027, %v1030
      %v1048 = vsel %vm1046, %v1036, 2102212464
      %v1049 = vsel %vm1045, %v1033, %v1048
      %v1050 = vsel %vm1044, %v1047, %v1049
      %v1051 = vsel %vm1043, %v1030, %v1033
      %v1052 = vsel %vm1046, %v1039, 920167782
      %v1053 = vsel %vm1045, %v1036, %v1052
      %v1054 = vsel %vm1044, %v1051, %v1053
      %v1055 = vsel %vm1043, %v1033, %v1036
      %v1056 = vsel %vm1046, %v1042, 1326507024
      %v1057 = vsel %vm1045, %v1039, %v1056
      %v1058 = vsel %vm1044, %v1055, %v1057
      %v1059 = vshll.u32 %v1019, 8
      %v1060 = vand.u32 %v1059, 65535
      %v1061 = vshrl.u32 %v1059, 16
      %v1062 = vand.u32 %v1058, 65535
      %v1063 = vshrl.u32 %v1058, 16
      %v1064 = vmul.u32 %v1060, %v1062
      %v1065 = vmul.u32 %v1060, %v1063
      %v1066 = vmul.u32 %v1061, %v1062
      %v1067 = vmul.u32 %v1061, %v1063
      %v1068 = vshll.u32 %v1065, 16
      %v1069 = vshrl.u32 %v1065, 16
      %v1070 = vshll.u32 %v1066, 16
      %v1071 = vshrl.u32 %v1066, 16
      %vm1072 = vc.u32 %v1064, %v1068
      %v1073 = vsel %vm1072, 1, 0
      %v1074 = vadd.s32 %v1064, %v1068
      %v1075 = vadd.s32 %v1067, %v1073
      %vm1076 = vc.u32 %v1074, %v1070
      %v1077 = vsel %vm1076, 1, 0
      %v1078 = vadd.s32 %v1074, %v1070
      %v1079 = vadd.s32 %v1075, %v1077
      %v1080 = vadd.s32 %v1079, %v1069
      %v1081 = vadd.s32 %v1080, %v1071
      %v1082 = vand.u32 %v1059, 65535
      %v1083 = vshrl.u32 %v1059, 16
      %v1084 = vand.u32 %v1054, 65535
      %v1085 = vshrl.u32 %v1054, 16
      %v1086 = vmul.u32 %v1082, %v1084
      %v1087 = vmul.u32 %v1082, %v1085
      %v1088 = vmul.u32 %v1083, %v1084
      %v1089 = vmul.u32 %v1083, %v1085
      %v1090 = vshll.u32 %v1087, 16
      %v1091 = vshrl.u32 %v1087, 16
      %v1092 = vshll.u32 %v1088, 16
      %v1093 = vshrl.u32 %v1088, 16
      %vm1094 = vc.u32 %v1086, %v1090
      %v1095 = vsel %vm1094, 1, 0
      %v1096 = vadd.s32 %v1086, %v1090
      %v1097 = vadd.s32 %v1089, %v1095
      %vm1098 = vc.u32 %v1096, %v1092
      %v1099 = vsel %vm1098, 1, 0
      %v1100 = vadd.s32 %v1096, %v1092
      %v1101 = vadd.s32 %v1097, %v1099
      %v1102 = vadd.s32 %v1101, %v1091
      %v1103 = vadd.s32 %v1102, %v1093
      %v1104 = vmul.u32 %v1059, %v1050
      %v1105 = vadd.s32 %v1081, %v1100
      %vm1106 = vc.u32 %v1081, %v1100
      %v1107 = vadd.s32 %v1103, 1
      %v1108 = vsel %vm1106, %v1107, %v1103
      %v1109 = vadd.s32 %v1104, %v1108
      %v1110 = vadd.s32 %v1109, 536870912
      %v1111 = vshrl.u32 %v1110, 30
      %v1112 = vshll.u32 %v1111, 30
      %v1113 = vsub.s32 %v1109, %v1112
      %vm1114 = vcmp.lt.s32.totalorder %v1113, 0
      %v1115 = vsub.s32 0, %v1113
      %v1116 = vsel %vm1114, %v1115, %v1113
      %v1117 = vclz %v1116
      %v1118 = vsub.s32 %v1117, 2
      %vm1119 = vcmp.gt.s32.totalorder 0, %v1118
      %v1120 = vsel %vm1119, 0, %v1118
      %v1121 = vsub.s32 32, %v1120
      %v1122 = vshll.u32 %v1113, %v1120
      %v1123 = vshrl.u32 %v1105, %v1121
      %v1124 = vor.u32 %v1122, %v1123
      %v1125 = vsub.s32 4294967266, %v1120
      %v1126 = vadd.s32 %v1125, 127
      %v1127 = vshll.u32 %v1126, 23
      %v1128 = vor.u32 4788187, %v1127
      %v1129 = vand.u32 2147483647, %v1128
      %v1131 = vcvt.s32.f32 %v1124
      %v1132 = vmul.f32 %v1131, %v1129
      %v1133 = vxor.u32 %v1132, 2147483648
      %v1134 = vsel %vm1013, %v1133, %v1132
      %v1135 = vsub.s32 4, %v1111
      %v1136 = vsel %vm1013, %v1135, %v1111
      %v1137 = vsel %vm1012, %v1010, %v1134
      %v1138 = vsel %vm1012, 0, %v1136
      %v1139 = vmul.f32 %v1137, %v1137
      %v1140 = vmul.f32 %v1139, -0.001358992
      %v1141 = vadd.f32 %v1140, 0.041655596
      %v1142 = vmul.f32 %v1139, %v1141
      %v1143 = vadd.f32 %v1142, -0.4999988
      %v1144 = vmul.f32 %v1139, %v1143
      %v1145 = vadd.f32 1.0, %v1144
      %v1146 = vmul.f32 %v1137, %v1137
      %v1147 = vmul.f32 %v1146, -0.00019511016
      %v1148 = vadd.f32 %v1147, 0.008332121
      %v1149 = vmul.f32 %v1146, %v1148
      %v1150 = vadd.f32 %v1149, -0.16666654
      %v1151 = vmul.f32 %v1146, %v1150
      %v1152 = vadd.f32 %v1151, 1.0
      %v1153 = vmul.f32 %v1152, %v1137
      %vm1154 = vweird.f32 %v1010
      %v1155 = vand.u32 %v1138, 3
      %vm1156 = vcmp.lt.s32.totalorder %v1155, 2
      %vm1157 = vcmp.eq.s32.totalorder %v1155, 0
      %v1158 = vxor.u32 %v1153, 2147483648
      %v1159 = vsel %vm1157, %v1145, %v1158
      %vm1160 = vcmp.eq.s32.totalorder %v1155, 2
      %v1161 = vxor.u32 %v1145, 2147483648
      %v1162 = vsel %vm1160, %v1161, %v1153
      %v1163 = vsel %vm1156, %v1159, %v1162
      %v1164 = vsel %vm1154, nan, %v1163
      %v1165 = vmul.f32 %v320, %v1164
      %v1166 = vadd.f32 %v1165, %v322
      %v1167 = vsub.f32 %v1009, %v1166
      %v1168 = vmul.f32 %v325, %v1167
      %vm1169 = vcmp.eq.s32.totalorder %v70, 5
      %v1170 = vmul.f32 %v328, %v1166
      %v1171 = vadd.f32 %v1170, %v330
      %v1172 = vperm.slane %v1171, 5
      %v1173 = vsel %vm1169, %v1172, %v1005
      %v1175 = vrot.slane %v1168, 7
      %v1177 = vadd.f32 %v160, %v1175
      %v1178 = vmul.f32 %v1177, 3.1415927
      %v1179 = vand.u32 2147483647, %v1178
      %vm1180 = vcmp.le.f32.partialorder %v1179, 0.7853982
      %vm1181 = vcmp.lt.s32.totalorder %v1178, 0
      %v1182 = vand.u32 %v1178, 2139095040
      %v1183 = vshrl.u32 %v1182, 23
      %v1184 = vsub.s32 %v1183, 127
      %v1185 = vand.u32 2147483647, %v1178
      %v1186 = vand.u32 %v1185, 8388607
      %v1187 = vor.u32 %v1186, 8388608
      %v1188 = vsub.s32 0, %v1187
      %v1189 = vadd.s32 %v1184, 1
      %vm1190 = vcmp.gt.s32.totalorder %v1189, 0
      %v1191 = vsel %vm1190, %v1189, 0
      %v1192 = vshrl.u32 %v1191, 5
      %v1193 = vand.u32 %v1191, 31
      %v1194 = vsub.s32 32, %v1193
      %v1195 = vshrl.u32 683565275, %v1194
      %v1196 = vshll.u32 683565275, %v1193
      %v1197 = vshrl.u32 2475754826, %v1194
      %v1198 = vor.u32 %v1196, %v1197
      %v1199 = vshll.u32 2475754826, %v1193
      %v1200 = vshrl.u32 2131351028, %v1194
      %v1201 = vor.u32 %v1199, %v1200
      %v1202 = vshll.u32 2131351028, %v1193
      %v1203 = vshrl.u32 2102212464, %v1194
      %v1204 = vor.u32 %v1202, %v1203
      %v1205 = vshll.u32 2102212464, %v1193
      %v1206 = vshrl.u32 920167782, %v1194
      %v1207 = vor.u32 %v1205, %v1206
      %v1208 = vshll.u32 920167782, %v1193
      %v1209 = vshrl.u32 1326507024, %v1194
      %v1210 = vor.u32 %v1208, %v1209
      %vm1211 = vcmp.lt.s32.totalorder %v1192, 1
      %vm1212 = vcmp.lt.s32.totalorder %v1192, 2
      %vm1213 = vcmp.lt.s32.totalorder %v1192, 3
      %vm1214 = vcmp.lt.s32.totalorder %v1192, 4
      %v1215 = vsel %vm1211, %v1195, %v1198
      %v1216 = vsel %vm1214, %v1204, 2102212464
      %v1217 = vsel %vm1213, %v1201, %v1216
      %v1218 = vsel %vm1212, %v1215, %v1217
      %v1219 = vsel %vm1211, %v1198, %v1201
      %v1220 = vsel %vm1214, %v1207, 920167782
      %v1221 = vsel %vm1213, %v1204, %v1220
      %v1222 = vsel %vm1212, %v1219, %v1221
      %v1223 = vsel %vm1211, %v1201, %v1204
      %v1224 = vsel %vm1214, %v1210, 1326507024
      %v1225 = vsel %vm1213, %v1207, %v1224
      %v1226 = vsel %vm1212, %v1223, %v1225
      %v1227 = vshll.u32 %v1187, 8
      %v1228 = vand.u32 %v1227, 65535
      %v1229 = vshrl.u32 %v1227, 16
      %v1230 = vand.u32 %v1226, 65535
      %v1231 = vshrl.u32 %v1226, 16
      %v1232 = vmul.u32 %v1228, %v1230
      %v1233 = vmul.u32 %v1228, %v1231
      %v1234 = vmul.u32 %v1229, %v1230
      %v1235 = vmul.u32 %v1229, %v1231
      %v1236 = vshll.u32 %v1233, 16
      %v1237 = vshrl.u32 %v1233, 16
      %v1238 = vshll.u32 %v1234, 16
      %v1239 = vshrl.u32 %v1234, 16
      %vm1240 = vc.u32 %v1232, %v1236
      %v1241 = vsel %vm1240, 1, 0
      %v1242 = vadd.s32 %v1232, %v1236
      %v1243 = vadd.s32 %v1235, %v1241
      %vm1244 = vc.u32 %v1242, %v1238
      %v1245 = vsel %vm1244, 1, 0
      %v1246 = vadd.s32 %v1242, %v1238
      %v1247 = vadd.s32 %v1243, %v1245
      %v1248 = vadd.s32 %v1247, %v1237
      %v1249 = vadd.s32 %v1248, %v1239
      %v1250 = vand.u32 %v1227, 65535
      %v1251 = vshrl.u32 %v1227, 16
      %v1252 = vand.u32 %v1222, 65535
      %v1253 = vshrl.u32 %v1222, 16
      %v1254 = vmul.u32 %v1250, %v1252
      %v1255 = vmul.u32 %v1250, %v1253
      %v1256 = vmul.u32 %v1251, %v1252
      %v1257 = vmul.u32 %v1251, %v1253
      %v1258 = vshll.u32 %v1255, 16
      %v1259 = vshrl.u32 %v1255, 16
      %v1260 = vshll.u32 %v1256, 16
      %v1261 = vshrl.u32 %v1256, 16
      %vm1262 = vc.u32 %v1254, %v1258
      %v1263 = vsel %vm1262, 1, 0
      %v1264 = vadd.s32 %v1254, %v1258
      %v1265 = vadd.s32 %v1257, %v1263
      %vm1266 = vc.u32 %v1264, %v1260
      %v1267 = vsel %vm1266, 1, 0
      %v1268 = vadd.s32 %v1264, %v1260
      %v1269 = vadd.s32 %v1265, %v1267
      %v1270 = vadd.s32 %v1269, %v1259
      %v1271 = vadd.s32 %v1270, %v1261
      %v1272 = vmul.u32 %v1227, %v1218
      %v1273 = vadd.s32 %v1249, %v1268
      %vm1274 = vc.u32 %v1249, %v1268
      %v1275 = vadd.s32 %v1271, 1
      %v1276 = vsel %vm1274, %v1275, %v1271
      %v1277 = vadd.s32 %v1272, %v1276
      %v1278 = vadd.s32 %v1277, 536870912
      %v1279 = vshrl.u32 %v1278, 30
      %v1280 = vshll.u32 %v1279, 30
      %v1281 = vsub.s32 %v1277, %v1280
      %vm1282 = vcmp.lt.s32.totalorder %v1281, 0
      %v1283 = vsub.s32 0, %v1281
      %v1284 = vsel %vm1282, %v1283, %v1281
      %v1285 = vclz %v1284
      %v1286 = vsub.s32 %v1285, 2
      %vm1287 = vcmp.gt.s32.totalorder 0, %v1286
      %v1288 = vsel %vm1287, 0, %v1286
      %v1289 = vsub.s32 32, %v1288
      %v1290 = vshll.u32 %v1281, %v1288
      %v1291 = vshrl.u32 %v1273, %v1289
      %v1292 = vor.u32 %v1290, %v1291
      %v1293 = vsub.s32 4294967266, %v1288
      %v1294 = vadd.s32 %v1293, 127
      %v1295 = vshll.u32 %v1294, 23
      %v1296 = vor.u32 4788187, %v1295
      %v1297 = vand.u32 2147483647, %v1296
      %v1299 = vcvt.s32.f32 %v1292
      %v1300 = vmul.f32 %v1299, %v1297
      %v1301 = vxor.u32 %v1300, 2147483648
      %v1302 = vsel %vm1181, %v1301, %v1300
      %v1303 = vsub.s32 4, %v1279
      %v1304 = vsel %vm1181, %v1303, %v1279
      %v1305 = vsel %vm1180, %v1178, %v1302
      %v1306 = vsel %vm1180, 0, %v1304
      %v1307 = vmul.f32 %v1305, %v1305
      %v1308 = vmul.f32 %v1307, -0.001358992
      %v1309 = vadd.f32 %v1308, 0.041655596
      %v1310 = vmul.f32 %v1307, %v1309
      %v1311 = vadd.f32 %v1310, -0.4999988
      %v1312 = vmul.f32 %v1307, %v1311
      %v1313 = vadd.f32 1.0, %v1312
      %v1314 = vmul.f32 %v1305, %v1305
      %v1315 = vmul.f32 %v1314, -0.00019511016
      %v1316 = vadd.f32 %v1315, 0.008332121
      %v1317 = vmul.f32 %v1314, %v1316
      %v1318 = vadd.f32 %v1317, -0.16666654
      %v1319 = vmul.f32 %v1314, %v1318
      %v1320 = vadd.f32 %v1319, 1.0
      %v1321 = vmul.f32 %v1320, %v1305
      %vm1322 = vweird.f32 %v1178
      %v1323 = vand.u32 %v1306, 3
      %vm1324 = vcmp.lt.s32.totalorder %v1323, 2
      %vm1325 = vcmp.eq.s32.totalorder %v1323, 0
      %v1326 = vxor.u32 %v1321, 2147483648
      %v1327 = vsel %vm1325, %v1313, %v1326
      %vm1328 = vcmp.eq.s32.totalorder %v1323, 2
      %v1329 = vxor.u32 %v1313, 2147483648
      %v1330 = vsel %vm1328, %v1329, %v1321
      %v1331 = vsel %vm1324, %v1327, %v1330
      %v1332 = vsel %vm1322, nan, %v1331
      %v1333 = vmul.f32 %v320, %v1332
      %v1334 = vadd.f32 %v1333, %v322
      %v1335 = vsub.f32 %v1177, %v1334
      %v1336 = vmul.f32 %v325, %v1335
      %vm1337 = vcmp.eq.s32.totalorder %v70, 6
      %v1338 = vmul.f32 %v328, %v1334
      %v1339 = vadd.f32 %v1338, %v330
      %v1340 = vperm.slane %v1339, 6
      %v1341 = vsel %vm1337, %v1340, %v1173
      %v1343 = vrot.slane %v1336, 7
      %v1345 = vadd.f32 %v160, %v1343
      %v1346 = vmul.f32 %v1345, 3.1415927
      %v1347 = vand.u32 2147483647, %v1346
      %vm1348 = vcmp.le.f32.partialorder %v1347, 0.7853982
      %vm1349 = vcmp.lt.s32.totalorder %v1346, 0
      %v1350 = vand.u32 %v1346, 2139095040
      %v1351 = vshrl.u32 %v1350, 23
      %v1352 = vsub.s32 %v1351, 127
      %v1353 = vand.u32 2147483647, %v1346
      %v1354 = vand.u32 %v1353, 8388607
      %v1355 = vor.u32 %v1354, 8388608
      %v1356 = vsub.s32 0, %v1355
      %v1357 = vadd.s32 %v1352, 1
      %vm1358 = vcmp.gt.s32.totalorder %v1357, 0
      %v1359 = vsel %vm1358, %v1357, 0
      %v1360 = vshrl.u32 %v1359, 5
      %v1361 = vand.u32 %v1359, 31
      %v1362 = vsub.s32 32, %v1361
      %v1363 = vshrl.u32 683565275, %v1362
      %v1364 = vshll.u32 683565275, %v1361
      %v1365 = vshrl.u32 2475754826, %v1362
      %v1366 = vor.u32 %v1364, %v1365
      %v1367 = vshll.u32 2475754826, %v1361
      %v1368 = vshrl.u32 2131351028, %v1362
      %v1369 = vor.u32 %v1367, %v1368
      %v1370 = vshll.u32 2131351028, %v1361
      %v1371 = vshrl.u32 2102212464, %v1362
      %v1372 = vor.u32 %v1370, %v1371
      %v1373 = vshll.u32 2102212464, %v1361
      %v1374 = vshrl.u32 920167782, %v1362
      %v1375 = vor.u32 %v1373, %v1374
      %v1376 = vshll.u32 920167782, %v1361
      %v1377 = vshrl.u32 1326507024, %v1362
      %v1378 = vor.u32 %v1376, %v1377
      %vm1379 = vcmp.lt.s32.totalorder %v1360, 1
      %vm1380 = vcmp.lt.s32.totalorder %v1360, 2
      %vm1381 = vcmp.lt.s32.totalorder %v1360, 3
      %vm1382 = vcmp.lt.s32.totalorder %v1360, 4
      %v1383 = vsel %vm1379, %v1363, %v1366
      %v1384 = vsel %vm1382, %v1372, 2102212464
      %v1385 = vsel %vm1381, %v1369, %v1384
      %v1386 = vsel %vm1380, %v1383, %v1385
      %v1387 = vsel %vm1379, %v1366, %v1369
      %v1388 = vsel %vm1382, %v1375, 920167782
      %v1389 = vsel %vm1381, %v1372, %v1388
      %v1390 = vsel %vm1380, %v1387, %v1389
      %v1391 = vsel %vm1379, %v1369, %v1372
      %v1392 = vsel %vm1382, %v1378, 1326507024
      %v1393 = vsel %vm1381, %v1375, %v1392
      %v1394 = vsel %vm1380, %v1391, %v1393
      %v1395 = vshll.u32 %v1355, 8
      %v1396 = vand.u32 %v1395, 65535
      %v1397 = vshrl.u32 %v1395, 16
      %v1398 = vand.u32 %v1394, 65535
      %v1399 = vshrl.u32 %v1394, 16
      %v1400 = vmul.u32 %v1396, %v1398
      %v1401 = vmul.u32 %v1396, %v1399
      %v1402 = vmul.u32 %v1397, %v1398
      %v1403 = vmul.u32 %v1397, %v1399
      %v1404 = vshll.u32 %v1401, 16
      %v1405 = vshrl.u32 %v1401, 16
      %v1406 = vshll.u32 %v1402, 16
      %v1407 = vshrl.u32 %v1402, 16
      %vm1408 = vc.u32 %v1400, %v1404
      %v1409 = vsel %vm1408, 1, 0
      %v1410 = vadd.s32 %v1400, %v1404
      %v1411 = vadd.s32 %v1403, %v1409
      %vm1412 = vc.u32 %v1410, %v1406
      %v1413 = vsel %vm1412, 1, 0
      %v1414 = vadd.s32 %v1410, %v1406
      %v1415 = vadd.s32 %v1411, %v1413
      %v1416 = vadd.s32 %v1415, %v1405
      %v1417 = vadd.s32 %v1416, %v1407
      %v1418 = vand.u32 %v1395, 65535
      %v1419 = vshrl.u32 %v1395, 16
      %v1420 = vand.u32 %v1390, 65535
      %v1421 = vshrl.u32 %v1390, 16
      %v1422 = vmul.u32 %v1418, %v1420
      %v1423 = vmul.u32 %v1418, %v1421
      %v1424 = vmul.u32 %v1419, %v1420
      %v1425 = vmul.u32 %v1419, %v1421
      %v1426 = vshll.u32 %v1423, 16
      %v1427 = vshrl.u32 %v1423, 16
      %v1428 = vshll.u32 %v1424, 16
      %v1429 = vshrl.u32 %v1424, 16
      %vm1430 = vc.u32 %v1422, %v1426
      %v1431 = vsel %vm1430, 1, 0
      %v1432 = vadd.s32 %v1422, %v1426
      %v1433 = vadd.s32 %v1425, %v1431
      %vm1434 = vc.u32 %v1432, %v1428
      %v1435 = vsel %vm1434, 1, 0
      %v1436 = vadd.s32 %v1432, %v1428
      %v1437 = vadd.s32 %v1433, %v1435
      %v1438 = vadd.s32 %v1437, %v1427
      %v1439 = vadd.s32 %v1438, %v1429
      %v1440 = vmul.u32 %v1395, %v1386
      %v1441 = vadd.s32 %v1417, %v1436
      %vm1442 = vc.u32 %v1417, %v1436
      %v1443 = vadd.s32 %v1439, 1
      %v1444 = vsel %vm1442, %v1443, %v1439
      %v1445 = vadd.s32 %v1440, %v1444
      %v1446 = vadd.s32 %v1445, 536870912
      %v1447 = vshrl.u32 %v1446, 30
      %v1448 = vshll.u32 %v1447, 30
      %v1449 = vsub.s32 %v1445, %v1448
      %vm1450 = vcmp.lt.s32.totalorder %v1449, 0
      %v1451 = vsub.s32 0, %v1449
      %v1452 = vsel %vm1450, %v1451, %v1449
      %v1453 = vclz %v1452
      %v1454 = vsub.s32 %v1453, 2
      %vm1455 = vcmp.gt.s32.totalorder 0, %v1454
      %v1456 = vsel %vm1455, 0, %v1454
      %v1457 = vsub.s32 32, %v1456
      %v1458 = vshll.u32 %v1449, %v1456
      %v1459 = vshrl.u32 %v1441, %v1457
      %v1460 = vor.u32 %v1458, %v1459
      %v1461 = vsub.s32 4294967266, %v1456
      %v1462 = vadd.s32 %v1461, 127
      %v1463 = vshll.u32 %v1462, 23
      %v1464 = vor.u32 4788187, %v1463
      %v1465 = vand.u32 2147483647, %v1464
      %v1467 = vcvt.s32.f32 %v1460
      %v1468 = vmul.f32 %v1467, %v1465
      %v1469 = vxor.u32 %v1468, 2147483648
      %v1470 = vsel %vm1349, %v1469, %v1468
      %v1471 = vsub.s32 4, %v1447
      %v1472 = vsel %vm1349, %v1471, %v1447
      %v1473 = vsel %vm1348, %v1346, %v1470
      %v1474 = vsel %vm1348, 0, %v1472
      %v1475 = vmul.f32 %v1473, %v1473
      %v1476 = vmul.f32 %v1475, -0.001358992
      %v1477 = vadd.f32 %v1476, 0.041655596
      %v1478 = vmul.f32 %v1475, %v1477
      %v1479 = vadd.f32 %v1478, -0.4999988
      %v1480 = vmul.f32 %v1475, %v1479
      %v1481 = vadd.f32 1.0, %v1480
      %v1482 = vmul.f32 %v1473, %v1473
      %v1483 = vmul.f32 %v1482, -0.00019511016
      %v1484 = vadd.f32 %v1483, 0.008332121
      %v1485 = vmul.f32 %v1482, %v1484
      %v1486 = vadd.f32 %v1485, -0.16666654
      %v1487 = vmul.f32 %v1482, %v1486
      %v1488 = vadd.f32 %v1487, 1.0
      %v1489 = vmul.f32 %v1488, %v1473
      %vm1490 = vweird.f32 %v1346
      %v1491 = vand.u32 %v1474, 3
      %vm1492 = vcmp.lt.s32.totalorder %v1491, 2
      %vm1493 = vcmp.eq.s32.totalorder %v1491, 0
      %v1494 = vxor.u32 %v1489, 2147483648
      %v1495 = vsel %vm1493, %v1481, %v1494
      %vm1496 = vcmp.eq.s32.totalorder %v1491, 2
      %v1497 = vxor.u32 %v1481, 2147483648
      %v1498 = vsel %vm1496, %v1497, %v1489
      %v1499 = vsel %vm1492, %v1495, %v1498
      %v1500 = vsel %vm1490, nan, %v1499
      %v1501 = vmul.f32 %v320, %v1500
      %v1502 = vadd.f32 %v1501, %v322
      %v1503 = vsub.f32 %v1345, %v1502
      %v1504 = vmul.f32 %v325, %v1503
      %vm1505 = vcmp.eq.s32.totalorder %v70, 7
      %v1506 = vmul.f32 %v328, %v1502
      %v1507 = vadd.f32 %v1506, %v330
      %v1508 = vperm.slane %v1507, 7
      %v1509 = vsel %vm1505, %v1508, %v1341
      %s1510 = scalar_lea.vmem [#allocation9], %s78
      %1511 = vst [vmem:[%s1510] sm:$0xff] %v1509
    $region30: #{tpu_custom_call.1} parent=1 // loop_footer
      %s76 = sadd.s32 1, %s72
    $region31: #{tpu_custom_call.1} parent=1 // loop_footer_branch
      %71 = sbr.rel target = $region27
    $region32: #{tpu_custom_call.1} parent=1 // loop_exit
      _
    // Predicated region
    $region33: #{tpu_custom_call.1} parent=1 // pred_check
      _
    $region34: #{tpu_custom_call.1} parent=1 // pred_check_branch
      %1513 = sbr.rel (0) target = $region36
    $region35: #{tpu_custom_call.1} parent=1 // pred_region
      %1515 = vsyncadd [#allocation4], 0
      %s1516 = sshll.u32 [#allocation9], 4
      %s1517 = int_to_ptr.vmem [resolvable:$true] %s1516
      %s1518 = sshll.u32 %s3, 4
      %s1519 = int_to_ptr.hbm [resolvable:$true] %s1518
      %1524 = dma.vmem_to_hbm [thread:$0]  %s1517, 384, %s1519, [#allocation4], 128, 128, 8
    $region36: #{tpu_custom_call.1} parent=1 // pred_fallthru
      _
    // Predicated region
    $region37: #{tpu_custom_call.1} parent=1 // pred_check
      _
    $region38: #{tpu_custom_call.1} parent=1 // pred_check_branch
      %1526 = sbr.rel (0) target = $region40
    $region39: #{tpu_custom_call.1} parent=1 // pred_region
      %1528 = dma.done [#allocation4], 384
    $region40: #{tpu_custom_call.1} parent=1 // pred_fallthru
      _
    %1529 = vsyncpa [#allocation3], 1
    %1530 = vsyncpa [#allocation4], 1
    %1531 = vsyncpa [#allocation5], 1
    %1532 = vsyncpa [#allocation6], 1

</llo_original>
